<compile_context>
chip_gen: v5e
topology: v5e:2x2
jax: 0.10.0
libtpu: 0.0.40
codegen_flags: <defaults>
</compile_context>

<pallas_src>
import jax
import jax.numpy as jnp
from jax import lax
from jax.experimental import pallas as pl
from jax.experimental.pallas import tpu as pltpu


def _round_up(v, m):
    return (v + m - 1) // m * m


# ----------------------------------------------------------------------------
# Pallas kernel: one grid step per GCN layer.
# ----------------------------------------------------------------------------
def _dual_gate_kernel(
    xh_ref,      # [Np, Hp]   f32   input_fc(x)            (layer-invariant)
    xskip_ref,   # [Np, Hp]   f32   skip_fc(input_fc(x0))  (layer-invariant)
    m_ref,       # [Np, Np]   bf16  M[s, t] = #edges s->t  (layer-invariant)
    deg_ref,     # [Np, 1]    f32   out-degree of each node
    w_conv_ref,  # [1, Hp, Hp] f32  this layer's GCN weight
    b_conv_ref,  # [1, 1, Hp]  f32  this layer's GCN bias
    w_fc_ref,    # [Hp, Cp]   f32   output fc weight
    b_fc_ref,    # [1, Cp]    f32   output fc bias
    out_ref,     # [Np, Cp]   f32   output (written on last layer only)
    x_sc,        # VMEM [Np, Hp] f32 carried node state
):
    layer = pl.program_id(0)
    hp = x_sc.shape[1]

    @pl.when(layer == 0)
    def _init():
        x_sc[...] = xh_ref[...]

    x = x_sc[...]                                                    # [Np, Hp]
    m = m_ref[...]                                                   # bf16

    # --- GCNConv (sum aggregation, normalize falsy) + ReLU -------------------
    xw = jnp.dot(x, w_conv_ref[0], preferred_element_type=jnp.float32)
    # agg[t] = sum_s M[s, t] * xw[s]  ==  (M^T @ xw)[t]; Mt never materialized.
    agg = lax.dot_general(
        m, xw.astype(jnp.bfloat16),
        dimension_numbers=(((0,), (0,)), ((), ())),
        preferred_element_type=jnp.float32)                          # [Np, Hp]
    x_agg = jnp.maximum(agg + b_conv_ref[0], 0.0)

    # --- gamma from local neighbour differences (one fused N^2 matmul) -------
    deg = deg_ref[...]                                               # [Np, 1]
    x_agg_sq = x_agg * x_agg
    sq = jnp.sum(x_agg_sq, axis=-1, keepdims=True)                   # [Np, 1]
    rhs = jnp.concatenate(
        [x_agg.astype(jnp.bfloat16), x_agg_sq.astype(jnp.bfloat16)], axis=-1)
    mm = jnp.dot(m, rhs, preferred_element_type=jnp.float32)         # [Np, 2Hp]
    m_xagg = mm[:, :hp]                                              # M @ x_agg
    m_sq = jnp.sum(mm[:, hp:], axis=-1, keepdims=True)               # M @ sq
    cross = jnp.sum(x_agg * m_xagg, axis=-1, keepdims=True)
    # exact value is a sum of squared differences, hence >= 0: clamp.
    gamma_raw = jnp.maximum(deg * sq + m_sq - 2.0 * cross, 0.0)
    gamma = jnp.tanh(gamma_raw / (deg + 1e-10))                      # [Np, 1]

    # --- dual gate (Gamma_smooth == Gamma_squash => B == C) ------------------
    a_gate = pl.reciprocal(1.0 + 2.0 * gamma, approx=True)           # EUP slot
    b_gate = gamma * a_gate
    x_new = a_gate * x + b_gate * (x_agg + xskip_ref[...])
    x_sc[...] = x_new

    @pl.when(layer == pl.num_programs(0) - 1)
    def _finalize():
        out_ref[...] = (
            jnp.dot(x_new, w_fc_ref[...], preferred_element_type=jnp.float32)
            + b_fc_ref[...])


# ----------------------------------------------------------------------------
# Wrapper: padding, hoisted projections, BlockSpecs, pallas_call.
# ----------------------------------------------------------------------------
def _make_forward(single_buffer_constants: bool):
    """Returns a jitted forward.  `single_buffer_constants` controls whether
    layer-invariant inputs use pipeline_mode=pl.Buffered(1)."""

    @jax.jit
    def forward(x, x0, m_counts, w_in, w_skip, w_conv, b_conv, w_fc, b_fc):
        n, c_in = x.shape
        hidden = w_in.shape[1]
        num_layers = w_conv.shape[0]
        c_out = w_fc.shape[1]

        npad = _round_up(n, 8)
        hp = _round_up(max(hidden, 128), 128)
        cp = _round_up(max(c_out, 128), 128)
        f32 = jnp.float32

        # ---- zero-pad weights / inputs to lane-friendly shapes --------------
        w_in_p = jnp.zeros((c_in, hp), f32).at[:, :hidden].set(w_in)
        w_skip_p = jnp.zeros((hp, hp), f32).at[:hidden, :hidden].set(w_skip)
        w_conv_p = (jnp.zeros((num_layers, hp, hp), f32)
                    .at[:, :hidden, :hidden].set(w_conv))
        b_conv_p = jnp.zeros((num_layers, 1, hp), f32).at[:, :, :hidden].set(b_conv)
        w_fc_p = jnp.zeros((hp, cp), f32).at[:hidden, :c_out].set(w_fc)
        b_fc_p = jnp.zeros((1, cp), f32).at[:, :c_out].set(b_fc)

        x_p = jnp.zeros((npad, c_in), f32).at[:n].set(x)
        x0_p = jnp.zeros((npad, c_in), f32).at[:n].set(x0)
        m_p = jnp.zeros((npad, npad), f32).at[:n, :n].set(m_counts)

        # ---- hoisted layer-invariant projections (plain XLA) ----------------
        xh = x_p @ w_in_p                               # [Np, Hp]
        xskip = (x0_p @ w_in_p) @ w_skip_p              # [Np, Hp]
        deg = jnp.sum(m_p, axis=1, keepdims=True)       # [Np, 1] out-degree
        m_bf16 = m_p.astype(jnp.bfloat16)               # counts exact in bf16

        const_mode = pl.Buffered(1) if single_buffer_constants else None

        def const_spec(shape):
            return pl.BlockSpec(shape, lambda l: (0,) * len(shape),
                                pipeline_mode=const_mode)

        in_specs = [
            const_spec((npad, hp)),                               # xh
            const_spec((npad, hp)),                               # xskip
            const_spec((npad, npad)),                             # M (bf16)
            const_spec((npad, 1)),                                # deg
            pl.BlockSpec((1, hp, hp), lambda l: (l, 0, 0)),       # W_conv[l]
            pl.BlockSpec((1, 1, hp), lambda l: (l, 0, 0)),        # b_conv[l]
            const_spec((hp, cp)),                                 # W_fc
            const_spec((1, cp)),                                  # b_fc
        ]
        out_spec = pl.BlockSpec((npad, cp), lambda l: (0, 0))

        grid_spec = pltpu.PrefetchScalarGridSpec(
            num_scalar_prefetch=0,
            grid=(num_layers,),
            in_specs=in_specs,
            out_specs=out_spec,
            scratch_shapes=[pltpu.VMEM((npad, hp), jnp.float32)],  # carried x
        )

        # rough VMEM budget: bf16 M (single buffer) + node slabs + weights.
        m_buffers = 1 if single_buffer_constants else 2
        vmem_est = (m_buffers * npad * npad * 2
                    + 3 * npad * hp * 4 + npad * 128 * 4
                    + 2 * 2 * (hp * hp + hp) * 4
                    + (hp * cp + cp) * 4
                    + 2 * npad * cp * 4)
        vmem_limit = min(max(int(1.5 * vmem_est) + (2 << 20), 16 << 20),
                         96 << 20)

        flops_per_layer = (2 * npad * npad * hp            # M^T @ xW
                           + 2 * npad * npad * 2 * hp      # M @ [x_agg|x_agg^2]
                           + 2 * npad * hp * hp            # x @ W_conv
                           + 16 * npad * hp)               # gate elementwise
        cost = pl.CostEstimate(
            flops=num_layers * flops_per_layer + 2 * npad * hp * cp,
            transcendentals=num_layers * 2 * npad,
            bytes_accessed=(npad * npad * 2 + 3 * npad * hp * 4
                            + num_layers * (hp * hp + hp) * 4
                            + (hp * cp + cp) * 4 + npad * cp * 4),
        )

        out_p = pl.pallas_call(
            _dual_gate_kernel,
            out_shape=jax.ShapeDtypeStruct((npad, cp), jnp.float32),
            grid_spec=grid_spec,
            compiler_params=pltpu.CompilerParams(
                dimension_semantics=("arbitrary",),
                vmem_limit_bytes=vmem_limit,
            ),
            cost_estimate=cost,
        )(xh, xskip, m_bf16, deg, w_conv_p, b_conv_p, w_fc_p, b_fc_p)

        return out_p[:n, :c_out]

    return forward


dual_gate_gcn_forward = _make_forward(True)


# ----------------------------------------------------------------------------
# Pure-JAX reference (edge-list form, mirrors the PyTorch forward exactly).
# ----------------------------------------------------------------------------
def reference_forward(x, x0, row, col, w_in, w_skip, w_conv, b_conv, w_fc, b_fc):
    n = x.shape[0]
    xcur = x @ w_in
    x0h = x0 @ w_in
    for l in range(w_conv.shape[0]):
        xw = xcur @ w_conv[l]
        agg = jnp.zeros_like(xw).at[col].add(xw[row]) + b_conv[l]
        x_agg = jnp.maximum(agg, 0.0)
        diffs = jnp.sum(jnp.abs(x_agg[row] - x_agg[col]) ** 2, axis=-1)
        gamma = jnp.zeros((n,), jnp.float32).at[row].add(diffs)
        deg = jnp.zeros((n,), jnp.float32).at[row].add(1.0) + 1e-10
        gamma = jnp.tanh(gamma / deg)[:, None]
        denom = 1.0 + 2.0 * gamma
        a_gate = 1.0 / denom
        b_gate = gamma / denom
        xcur = a_gate * xcur + b_gate * x_agg + b_gate * (x0h @ w_skip)
    return xcur @ w_fc + b_fc


if __name__ == "__main__":
    # Small, deterministic problem (N not a multiple of 8 to exercise padding).
    N, C_IN, HIDDEN, C_OUT, NUM_LAYERS = 20, 8, 32, 4, 3

    key = jax.random.PRNGKey(0)
    k_x, k_x0, k_win, k_wskip, k_wconv, k_bconv, k_wfc, k_bfc = (
        jax.random.split(key, 8))

    x = jax.random.normal(k_x, (N, C_IN), jnp.float32)
    x0 = jax.random.normal(k_x0, (N, C_IN), jnp.float32)

    # Deterministic graph: bidirectional ring plus a few chords.
    src, dst = [], []
    for i in range(N):
        src += [i, (i + 1) % N]
        dst += [(i + 1) % N, i]
    for i in range(0, N, 4):
        src += [i, (i + N // 2) % N]
        dst += [(i + N // 2) % N, i]
    row = jnp.asarray(src, jnp.int32)
    col = jnp.asarray(dst, jnp.int32)

    # Dense adjacency: M[s, t] = number of edges s -> t.
    m_counts = jnp.zeros((N, N), jnp.float32).at[row, col].add(1.0)

    # Deterministic synthetic parameters (module __init__ shapes).
    w_in = 0.1 * jax.random.normal(k_win, (C_IN, HIDDEN), jnp.float32)
    w_skip = 0.1 * jax.random.normal(k_wskip, (HIDDEN, HIDDEN), jnp.float32)
    w_conv = 0.1 * jax.random.normal(k_wconv, (NUM_LAYERS, HIDDEN, HIDDEN),
                                     jnp.float32)
    b_conv = 0.1 * jax.random.normal(k_bconv, (NUM_LAYERS, 1, HIDDEN),
                                     jnp.float32)
    w_fc = 0.1 * jax.random.normal(k_wfc, (HIDDEN, C_OUT), jnp.float32)
    b_fc = 0.1 * jax.random.normal(k_bfc, (1, C_OUT), jnp.float32)

    args = (x, x0, m_counts, w_in, w_skip, w_conv, b_conv, w_fc, b_fc)

    try:
        out = jax.block_until_ready(dual_gate_gcn_forward(*args))
    except Exception:
        # Fallback for JAX builds where single-buffer pipeline_mode is not
        # supported on the TPU top-level pipeline; semantics are identical.
        out = jax.block_until_ready(_make_forward(False)(*args))

    ref = reference_forward(x, x0, row, col, w_in, w_skip, w_conv, b_conv,
                            w_fc, b_fc)
    assert out.shape == (N, C_OUT)
    rel_err = float(jnp.linalg.norm(out - ref) /
                    (jnp.linalg.norm(ref) + 1e-30))
    # bf16 MXU operands + approx reciprocal => allow ~1% relative deviation.
    assert rel_err < 1e-2, f"mismatch vs reference: rel err {rel_err}"

    print("KERNEL_OK")
</pallas_src>

<mosaic_0001>
module attributes {stable_mosaic.version = 11 : i64} {
  func.func @_dual_gate_kernel(%arg0: i32, %arg1: memref<24x128xf32, #tpu.memory_space<vmem>>, %arg2: memref<24x128xf32, #tpu.memory_space<vmem>>, %arg3: memref<24x24xbf16, #tpu.memory_space<vmem>>, %arg4: memref<24x1xf32, #tpu.memory_space<vmem>>, %arg5: memref<1x128x128xf32, #tpu.memory_space<vmem>>, %arg6: memref<1x1x128xf32, #tpu.memory_space<vmem>>, %arg7: memref<128x128xf32, #tpu.memory_space<vmem>>, %arg8: memref<1x128xf32, #tpu.memory_space<vmem>>, %arg9: memref<24x128xf32, #tpu.memory_space<vmem>>, %arg10: memref<24x128xf32, #tpu.memory_space<vmem>>) attributes {dimension_semantics = [#tpu.dimension_semantics<arbitrary>], iteration_bounds = array<i64: 3>, scalar_prefetch = 0 : i64, scratch_operands = 1 : i64, tpu.core_type = #tpu.core_type<tc>, window_params = [{pipeline_mode = #tpu.pipeline_mode<synchronous>, transform_indices = @transform_0, window_bounds = array<i64: 24, 128>}, {pipeline_mode = #tpu.pipeline_mode<synchronous>, transform_indices = @transform_1, window_bounds = array<i64: 24, 128>}, {pipeline_mode = #tpu.pipeline_mode<synchronous>, transform_indices = @transform_2, window_bounds = array<i64: 24, 24>}, {pipeline_mode = #tpu.pipeline_mode<synchronous>, transform_indices = @transform_3, window_bounds = array<i64: 24, 1>}, {transform_indices = @transform_4, window_bounds = array<i64: 1, 128, 128>}, {transform_indices = @transform_5, window_bounds = array<i64: 1, 1, 128>}, {pipeline_mode = #tpu.pipeline_mode<synchronous>, transform_indices = @transform_6, window_bounds = array<i64: 128, 128>}, {pipeline_mode = #tpu.pipeline_mode<synchronous>, transform_indices = @transform_7, window_bounds = array<i64: 1, 128>}, {pipeline_mode = #tpu.pipeline_mode<synchronous>, transform_indices = @transform_8, window_bounds = array<i64: 24, 128>}]} {
    %c0_i32 = arith.constant 0 : i32
    %0 = arith.cmpi eq, %arg0, %c0_i32 : i32
    %1 = arith.extui %0 : i1 to i32
    %c0_i32_0 = arith.constant 0 : i32
    %2 = arith.cmpi ne, %1, %c0_i32_0 : i32
    scf.if %2 {
      %c0_28 = arith.constant 0 : index
      %c0_29 = arith.constant 0 : index
      %59 = vector.load %arg1[%c0_28, %c0_29] : memref<24x128xf32, #tpu.memory_space<vmem>>, vector<24x128xf32>
      %c0_30 = arith.constant 0 : index
      %c0_31 = arith.constant 0 : index
      %60 = vector.load %arg10[%c0_30, %c0_31] : memref<24x128xf32, #tpu.memory_space<vmem>>, vector<24x128xf32>
      tpu.vector_store %arg10[%c0_30, %c0_31], %59 {strides = array<i32>} : memref<24x128xf32, #tpu.memory_space<vmem>>, vector<24x128xf32>,
    } else {
    }
    %c0 = arith.constant 0 : index
    %c0_1 = arith.constant 0 : index
    %3 = vector.load %arg10[%c0, %c0_1] : memref<24x128xf32, #tpu.memory_space<vmem>>, vector<24x128xf32>
    %c0_2 = arith.constant 0 : index
    %c0_3 = arith.constant 0 : index
    %4 = vector.load %arg3[%c0_2, %c0_3] : memref<24x24xbf16, #tpu.memory_space<vmem>>, vector<24x24xbf16>
    %c0_4 = arith.constant 0 : index
    %c0_5 = arith.constant 0 : index
    %c0_6 = arith.constant 0 : index
    %5 = vector.load %arg5[%c0_4, %c0_5, %c0_6] : memref<1x128x128xf32, #tpu.memory_space<vmem>>, vector<1x128x128xf32>
    %6 = vector.shape_cast %5 : vector<1x128x128xf32> to vector<128x128xf32>
    %cst = arith.constant dense<0.000000e+00> : vector<24x128xf32>
    %7 = tpu.matmul %3, %6, %cst {dimension_numbers = #tpu.dot_dimension_numbers<[1], [0], [0], [1], [0, 0, 1, 1], [], []>} : vector<24x128xf32>, vector<128x128xf32>, vector<24x128xf32> -> vector<24x128xf32>
    %8 = arith.truncf %7 : vector<24x128xf32> to vector<24x128xbf16>
    %cst_7 = arith.constant dense<0.000000e+00> : vector<24x128xf32>
    %9 = tpu.matmul %4, %8, %cst_7 {dimension_numbers = #tpu.dot_dimension_numbers<[0], [0], [1], [1], [0, 1, 1, 1], [], []>} : vector<24x24xbf16>, vector<24x128xbf16>, vector<24x128xf32> -> vector<24x128xf32>
    %c0_8 = arith.constant 0 : index
    %c0_9 = arith.constant 0 : index
    %c0_10 = arith.constant 0 : index
    %10 = vector.load %arg6[%c0_8, %c0_9, %c0_10] : memref<1x1x128xf32, #tpu.memory_space<vmem>>, vector<1x1x128xf32>
    %11 = vector.shape_cast %10 : vector<1x1x128xf32> to vector<1x128xf32>
    %12 = vector.broadcast %11 : vector<1x128xf32> to vector<24x128xf32>
    %13 = arith.addf %9, %12 : vector<24x128xf32>
    %cst_11 = arith.constant 0.000000e+00 : f32
    %14 = vector.broadcast %cst_11 : f32 to vector<24x128xf32>
    %15 = arith.maximumf %13, %14 : vector<24x128xf32>
    %c0_12 = arith.constant 0 : index
    %c0_13 = arith.constant 0 : index
    %16 = vector.load %arg4[%c0_12, %c0_13] : memref<24x1xf32, #tpu.memory_space<vmem>>, vector<24x1xf32>
    %17 = arith.mulf %15, %15 : vector<24x128xf32>
    %cst_14 = arith.constant dense<0.000000e+00> : vector<24xf32>
    %18 = vector.multi_reduction <add>, %17, %cst_14 [1] : vector<24x128xf32> to vector<24xf32>
    %19 = vector.shape_cast %18 : vector<24xf32> to vector<24x1xf32>
    %20 = arith.truncf %15 : vector<24x128xf32> to vector<24x128xbf16>
    %21 = arith.truncf %17 : vector<24x128xf32> to vector<24x128xbf16>
    %22 = tpu.concatenate %20, %21 in 1 : vector<24x128xbf16>, vector<24x128xbf16> -> vector<24x256xbf16>
    %cst_15 = arith.constant dense<0.000000e+00> : vector<24x256xf32>
    %23 = tpu.matmul %4, %22, %cst_15 {dimension_numbers = #tpu.dot_dimension_numbers<[1], [0], [0], [1], [0, 0, 1, 1], [], []>} : vector<24x24xbf16>, vector<24x256xbf16>, vector<24x256xf32> -> vector<24x256xf32>
    %24 = vector.extract_strided_slice %23 {offsets = [0, 0], sizes = [24, 128], strides = [1, 1]} : vector<24x256xf32> to vector<24x128xf32>
    %25 = vector.extract_strided_slice %23 {offsets = [0, 128], sizes = [24, 128], strides = [1, 1]} : vector<24x256xf32> to vector<24x128xf32>
    %cst_16 = arith.constant dense<0.000000e+00> : vector<24xf32>
    %26 = vector.multi_reduction <add>, %25, %cst_16 [1] : vector<24x128xf32> to vector<24xf32>
    %27 = vector.shape_cast %26 : vector<24xf32> to vector<24x1xf32>
    %28 = arith.mulf %15, %24 : vector<24x128xf32>
    %cst_17 = arith.constant dense<0.000000e+00> : vector<24xf32>
    %29 = vector.multi_reduction <add>, %28, %cst_17 [1] : vector<24x128xf32> to vector<24xf32>
    %30 = vector.shape_cast %29 : vector<24xf32> to vector<24x1xf32>
    %31 = arith.mulf %16, %19 : vector<24x1xf32>
    %32 = arith.addf %31, %27 : vector<24x1xf32>
    %cst_18 = arith.constant 2.000000e+00 : f32
    %33 = vector.broadcast %cst_18 : f32 to vector<24x1xf32>
    %34 = arith.mulf %33, %30 : vector<24x1xf32>
    %35 = arith.subf %32, %34 : vector<24x1xf32>
    %cst_19 = arith.constant 0.000000e+00 : f32
    %36 = vector.broadcast %cst_19 : f32 to vector<24x1xf32>
    %37 = arith.maximumf %35, %36 : vector<24x1xf32>
    %cst_20 = arith.constant 1.000000e-10 : f32
    %38 = vector.broadcast %cst_20 : f32 to vector<24x1xf32>
    %39 = arith.addf %16, %38 : vector<24x1xf32>
    %40 = arith.divf %37, %39 : vector<24x1xf32>
    %41 = math.tanh %40 : vector<24x1xf32>
    %cst_21 = arith.constant 2.000000e+00 : f32
    %42 = vector.broadcast %cst_21 : f32 to vector<24x1xf32>
    %43 = arith.mulf %42, %41 : vector<24x1xf32>
    %cst_22 = arith.constant 1.000000e+00 : f32
    %44 = vector.broadcast %cst_22 : f32 to vector<24x1xf32>
    %45 = arith.addf %44, %43 : vector<24x1xf32>
    %46 = tpu.reciprocal %45 {approx = true} : vector<24x1xf32> -> vector<24x1xf32>
    %47 = arith.mulf %41, %46 : vector<24x1xf32>
    %48 = vector.broadcast %46 : vector<24x1xf32> to vector<24x128xf32>
    %49 = arith.mulf %48, %3 : vector<24x128xf32>
    %c0_23 = arith.constant 0 : index
    %c0_24 = arith.constant 0 : index
    %50 = vector.load %arg2[%c0_23, %c0_24] : memref<24x128xf32, #tpu.memory_space<vmem>>, vector<24x128xf32>
    %51 = arith.addf %15, %50 : vector<24x128xf32>
    %52 = vector.broadcast %47 : vector<24x1xf32> to vector<24x128xf32>
    %53 = arith.mulf %52, %51 : vector<24x128xf32>
    %54 = arith.addf %49, %53 : vector<24x128xf32>
    %c0_25 = arith.constant 0 : index
    %c0_26 = arith.constant 0 : index
    %55 = vector.load %arg10[%c0_25, %c0_26] : memref<24x128xf32, #tpu.memory_space<vmem>>, vector<24x128xf32>
    tpu.vector_store %arg10[%c0_25, %c0_26], %54 {strides = array<i32>} : memref<24x128xf32, #tpu.memory_space<vmem>>, vector<24x128xf32>,
    %c2_i32 = arith.constant 2 : i32
    %56 = arith.cmpi eq, %arg0, %c2_i32 : i32
    %57 = arith.extui %56 : i1 to i32
    %c0_i32_27 = arith.constant 0 : i32
    %58 = arith.cmpi ne, %57, %c0_i32_27 : i32
    scf.if %58 {
      %c0_28 = arith.constant 0 : index
      %c0_29 = arith.constant 0 : index
      %59 = vector.load %arg7[%c0_28, %c0_29] : memref<128x128xf32, #tpu.memory_space<vmem>>, vector<128x128xf32>
      %cst_30 = arith.constant dense<0.000000e+00> : vector<24x128xf32>
      %60 = tpu.matmul %54, %59, %cst_30 {dimension_numbers = #tpu.dot_dimension_numbers<[1], [0], [0], [1], [0, 0, 1, 1], [], []>} : vector<24x128xf32>, vector<128x128xf32>, vector<24x128xf32> -> vector<24x128xf32>
      %c0_31 = arith.constant 0 : index
      %c0_32 = arith.constant 0 : index
      %61 = vector.load %arg8[%c0_31, %c0_32] : memref<1x128xf32, #tpu.memory_space<vmem>>, vector<1x128xf32>
      %62 = vector.broadcast %61 : vector<1x128xf32> to vector<24x128xf32>
      %63 = arith.addf %60, %62 : vector<24x128xf32>
      %c0_33 = arith.constant 0 : index
      %c0_34 = arith.constant 0 : index
      %64 = vector.load %arg9[%c0_33, %c0_34] : memref<24x128xf32, #tpu.memory_space<vmem>>, vector<24x128xf32>
      tpu.vector_store %arg9[%c0_33, %c0_34], %63 {strides = array<i32>} : memref<24x128xf32, #tpu.memory_space<vmem>>, vector<24x128xf32>,
    } else {
    }
    return
  }
  func.func @transform_0(%arg0: i32) -> (i32, i32) {
    %c0_i32 = arith.constant 0 : i32
    %c0_i32_0 = arith.constant 0 : i32
    %c0_i32_1 = arith.constant 0 : i32
    return %c0_i32, %c0_i32_0 : i32, i32
  }
  func.func @transform_1(%arg0: i32) -> (i32, i32) {
    %c0_i32 = arith.constant 0 : i32
    %c0_i32_0 = arith.constant 0 : i32
    %c0_i32_1 = arith.constant 0 : i32
    return %c0_i32, %c0_i32_0 : i32, i32
  }
  func.func @transform_2(%arg0: i32) -> (i32, i32) {
    %c0_i32 = arith.constant 0 : i32
    %c0_i32_0 = arith.constant 0 : i32
    %c0_i32_1 = arith.constant 0 : i32
    return %c0_i32, %c0_i32_0 : i32, i32
  }
  func.func @transform_3(%arg0: i32) -> (i32, i32) {
    %c0_i32 = arith.constant 0 : i32
    %c0_i32_0 = arith.constant 0 : i32
    %c0_i32_1 = arith.constant 0 : i32
    return %c0_i32, %c0_i32_0 : i32, i32
  }
  func.func @transform_4(%arg0: i32) -> (i32, i32, i32) {
    %c0_i32 = arith.constant 0 : i32
    %c0_i32_0 = arith.constant 0 : i32
    %c0_i32_1 = arith.constant 0 : i32
    return %arg0, %c0_i32, %c0_i32_0 : i32, i32, i32
  }
  func.func @transform_5(%arg0: i32) -> (i32, i32, i32) {
    %c0_i32 = arith.constant 0 : i32
    %c0_i32_0 = arith.constant 0 : i32
    %c0_i32_1 = arith.constant 0 : i32
    return %arg0, %c0_i32, %c0_i32_0 : i32, i32, i32
  }
  func.func @transform_6(%arg0: i32) -> (i32, i32) {
    %c0_i32 = arith.constant 0 : i32
    %c0_i32_0 = arith.constant 0 : i32
    %c0_i32_1 = arith.constant 0 : i32
    return %c0_i32, %c0_i32_0 : i32, i32
  }
  func.func @transform_7(%arg0: i32) -> (i32, i32) {
    %c0_i32 = arith.constant 0 : i32
    %c0_i32_0 = arith.constant 0 : i32
    %c0_i32_1 = arith.constant 0 : i32
    return %c0_i32, %c0_i32_0 : i32, i32
  }
  func.func @transform_8(%arg0: i32) -> (i32, i32) {
    %c0_i32 = arith.constant 0 : i32
    %c0_i32_0 = arith.constant 0 : i32
    %c0_i32_1 = arith.constant 0 : i32
    return %c0_i32, %c0_i32_0 : i32, i32
  }
}

module attributes {stable_mosaic.version = 11 : i64} {
  func.func @_dual_gate_kernel(%arg0: i32, %arg1: memref<24x128xf32, #tpu.memory_space<vmem>>, %arg2: memref<24x128xf32, #tpu.memory_space<vmem>>, %arg3: memref<24x24xbf16, #tpu.memory_space<vmem>>, %arg4: memref<24x1xf32, #tpu.memory_space<vmem>>, %arg5: memref<1x128x128xf32, #tpu.memory_space<vmem>>, %arg6: memref<1x1x128xf32, #tpu.memory_space<vmem>>, %arg7: memref<128x128xf32, #tpu.memory_space<vmem>>, %arg8: memref<1x128xf32, #tpu.memory_space<vmem>>, %arg9: memref<24x128xf32, #tpu.memory_space<vmem>>, %arg10: memref<24x128xf32, #tpu.memory_space<vmem>>) attributes {dimension_semantics = [#tpu.dimension_semantics<arbitrary>], iteration_bounds = array<i64: 3>, scalar_prefetch = 0 : i64, scratch_operands = 1 : i64, tpu.core_type = #tpu.core_type<tc>, window_params = [{pipeline_mode = #tpu.pipeline_mode<synchronous>, transform_indices = @transform_0, window_bounds = array<i64: 24, 128>}, {pipeline_mode = #tpu.pipeline_mode<synchronous>, transform_indices = @transform_1, window_bounds = array<i64: 24, 128>}, {pipeline_mode = #tpu.pipeline_mode<synchronous>, transform_indices = @transform_2, window_bounds = array<i64: 24, 24>}, {pipeline_mode = #tpu.pipeline_mode<synchronous>, transform_indices = @transform_3, window_bounds = array<i64: 24, 1>}, {transform_indices = @transform_4, window_bounds = array<i64: 1, 128, 128>}, {transform_indices = @transform_5, window_bounds = array<i64: 1, 1, 128>}, {pipeline_mode = #tpu.pipeline_mode<synchronous>, transform_indices = @transform_6, window_bounds = array<i64: 128, 128>}, {pipeline_mode = #tpu.pipeline_mode<synchronous>, transform_indices = @transform_7, window_bounds = array<i64: 1, 128>}, {pipeline_mode = #tpu.pipeline_mode<synchronous>, transform_indices = @transform_8, window_bounds = array<i64: 24, 128>}]} {
    %c0_i32 = arith.constant 0 : i32
    %0 = arith.cmpi eq, %arg0, %c0_i32 : i32
    %1 = arith.extui %0 : i1 to i32
    %c0_i32_0 = arith.constant 0 : i32
    %2 = arith.cmpi ne, %1, %c0_i32_0 : i32
    scf.if %2 {
      %c0_28 = arith.constant 0 : index
      %c0_29 = arith.constant 0 : index
      %59 = vector.load %arg1[%c0_28, %c0_29] : memref<24x128xf32, #tpu.memory_space<vmem>>, vector<24x128xf32>
      %c0_30 = arith.constant 0 : index
      %c0_31 = arith.constant 0 : index
      %60 = vector.load %arg10[%c0_30, %c0_31] : memref<24x128xf32, #tpu.memory_space<vmem>>, vector<24x128xf32>
      tpu.vector_store %arg10[%c0_30, %c0_31], %59 {strides = array<i32>} : memref<24x128xf32, #tpu.memory_space<vmem>>, vector<24x128xf32>,
    } else {
    }
    %c0 = arith.constant 0 : index
    %c0_1 = arith.constant 0 : index
    %3 = vector.load %arg10[%c0, %c0_1] : memref<24x128xf32, #tpu.memory_space<vmem>>, vector<24x128xf32>
    %c0_2 = arith.constant 0 : index
    %c0_3 = arith.constant 0 : index
    %4 = vector.load %arg3[%c0_2, %c0_3] : memref<24x24xbf16, #tpu.memory_space<vmem>>, vector<24x24xbf16>
    %c0_4 = arith.constant 0 : index
    %c0_5 = arith.constant 0 : index
    %c0_6 = arith.constant 0 : index
    %5 = vector.load %arg5[%c0_4, %c0_5, %c0_6] : memref<1x128x128xf32, #tpu.memory_space<vmem>>, vector<1x128x128xf32>
    %6 = vector.shape_cast %5 : vector<1x128x128xf32> to vector<128x128xf32>
    %cst = arith.constant dense<0.000000e+00> : vector<24x128xf32>
    %7 = tpu.matmul %3, %6, %cst {dimension_numbers = #tpu.dot_dimension_numbers<[1], [0], [0], [1], [0, 0, 1, 1], [], []>} : vector<24x128xf32>, vector<128x128xf32>, vector<24x128xf32> -> vector<24x128xf32>
    %8 = arith.truncf %7 : vector<24x128xf32> to vector<24x128xbf16>
    %cst_7 = arith.constant dense<0.000000e+00> : vector<24x128xf32>
    %9 = tpu.matmul %4, %8, %cst_7 {dimension_numbers = #tpu.dot_dimension_numbers<[0], [0], [1], [1], [0, 1, 1, 1], [], []>} : vector<24x24xbf16>, vector<24x128xbf16>, vector<24x128xf32> -> vector<24x128xf32>
    %c0_8 = arith.constant 0 : index
    %c0_9 = arith.constant 0 : index
    %c0_10 = arith.constant 0 : index
    %10 = vector.load %arg6[%c0_8, %c0_9, %c0_10] : memref<1x1x128xf32, #tpu.memory_space<vmem>>, vector<1x1x128xf32>
    %11 = vector.shape_cast %10 : vector<1x1x128xf32> to vector<1x128xf32>
    %12 = vector.broadcast %11 : vector<1x128xf32> to vector<24x128xf32>
    %13 = arith.addf %9, %12 : vector<24x128xf32>
    %cst_11 = arith.constant 0.000000e+00 : f32
    %14 = vector.broadcast %cst_11 : f32 to vector<24x128xf32>
    %15 = arith.maximumf %13, %14 : vector<24x128xf32>
    %c0_12 = arith.constant 0 : index
    %c0_13 = arith.constant 0 : index
    %16 = vector.load %arg4[%c0_12, %c0_13] : memref<24x1xf32, #tpu.memory_space<vmem>>, vector<24x1xf32>
    %17 = arith.mulf %15, %15 : vector<24x128xf32>
    %cst_14 = arith.constant dense<0.000000e+00> : vector<24xf32>
    %18 = vector.multi_reduction <add>, %17, %cst_14 [1] : vector<24x128xf32> to vector<24xf32>
    %19 = vector.shape_cast %18 : vector<24xf32> to vector<24x1xf32>
    %20 = arith.truncf %15 : vector<24x128xf32> to vector<24x128xbf16>
    %21 = arith.truncf %17 : vector<24x128xf32> to vector<24x128xbf16>
    %22 = tpu.concatenate %20, %21 in 1 : vector<24x128xbf16>, vector<24x128xbf16> -> vector<24x256xbf16>
    %cst_15 = arith.constant dense<0.000000e+00> : vector<24x256xf32>
    %23 = tpu.matmul %4, %22, %cst_15 {dimension_numbers = #tpu.dot_dimension_numbers<[1], [0], [0], [1], [0, 0, 1, 1], [], []>} : vector<24x24xbf16>, vector<24x256xbf16>, vector<24x256xf32> -> vector<24x256xf32>
    %24 = vector.extract_strided_slice %23 {offsets = [0, 0], sizes = [24, 128], strides = [1, 1]} : vector<24x256xf32> to vector<24x128xf32>
    %25 = vector.extract_strided_slice %23 {offsets = [0, 128], sizes = [24, 128], strides = [1, 1]} : vector<24x256xf32> to vector<24x128xf32>
    %cst_16 = arith.constant dense<0.000000e+00> : vector<24xf32>
    %26 = vector.multi_reduction <add>, %25, %cst_16 [1] : vector<24x128xf32> to vector<24xf32>
    %27 = vector.shape_cast %26 : vector<24xf32> to vector<24x1xf32>
    %28 = arith.mulf %15, %24 : vector<24x128xf32>
    %cst_17 = arith.constant dense<0.000000e+00> : vector<24xf32>
    %29 = vector.multi_reduction <add>, %28, %cst_17 [1] : vector<24x128xf32> to vector<24xf32>
    %30 = vector.shape_cast %29 : vector<24xf32> to vector<24x1xf32>
    %31 = arith.mulf %16, %19 : vector<24x1xf32>
    %32 = arith.addf %31, %27 : vector<24x1xf32>
    %cst_18 = arith.constant 2.000000e+00 : f32
    %33 = vector.broadcast %cst_18 : f32 to vector<24x1xf32>
    %34 = arith.mulf %33, %30 : vector<24x1xf32>
    %35 = arith.subf %32, %34 : vector<24x1xf32>
    %cst_19 = arith.constant 0.000000e+00 : f32
    %36 = vector.broadcast %cst_19 : f32 to vector<24x1xf32>
    %37 = arith.maximumf %35, %36 : vector<24x1xf32>
    %cst_20 = arith.constant 1.000000e-10 : f32
    %38 = vector.broadcast %cst_20 : f32 to vector<24x1xf32>
    %39 = arith.addf %16, %38 : vector<24x1xf32>
    %40 = arith.divf %37, %39 : vector<24x1xf32>
    %41 = math.tanh %40 : vector<24x1xf32>
    %cst_21 = arith.constant 2.000000e+00 : f32
    %42 = vector.broadcast %cst_21 : f32 to vector<24x1xf32>
    %43 = arith.mulf %42, %41 : vector<24x1xf32>
    %cst_22 = arith.constant 1.000000e+00 : f32
    %44 = vector.broadcast %cst_22 : f32 to vector<24x1xf32>
    %45 = arith.addf %44, %43 : vector<24x1xf32>
    %46 = tpu.reciprocal %45 {approx = true} : vector<24x1xf32> -> vector<24x1xf32>
    %47 = arith.mulf %41, %46 : vector<24x1xf32>
    %48 = vector.broadcast %46 : vector<24x1xf32> to vector<24x128xf32>
    %49 = arith.mulf %48, %3 : vector<24x128xf32>
    %c0_23 = arith.constant 0 : index
    %c0_24 = arith.constant 0 : index
    %50 = vector.load %arg2[%c0_23, %c0_24] : memref<24x128xf32, #tpu.memory_space<vmem>>, vector<24x128xf32>
    %51 = arith.addf %15, %50 : vector<24x128xf32>
    %52 = vector.broadcast %47 : vector<24x1xf32> to vector<24x128xf32>
    %53 = arith.mulf %52, %51 : vector<24x128xf32>
    %54 = arith.addf %49, %53 : vector<24x128xf32>
    %c0_25 = arith.constant 0 : index
    %c0_26 = arith.constant 0 : index
    %55 = vector.load %arg10[%c0_25, %c0_26] : memref<24x128xf32, #tpu.memory_space<vmem>>, vector<24x128xf32>
    tpu.vector_store %arg10[%c0_25, %c0_26], %54 {strides = array<i32>} : memref<24x128xf32, #tpu.memory_space<vmem>>, vector<24x128xf32>,
    %c2_i32 = arith.constant 2 : i32
    %56 = arith.cmpi eq, %arg0, %c2_i32 : i32
    %57 = arith.extui %56 : i1 to i32
    %c0_i32_27 = arith.constant 0 : i32
    %58 = arith.cmpi ne, %57, %c0_i32_27 : i32
    scf.if %58 {
      %c0_28 = arith.constant 0 : index
      %c0_29 = arith.constant 0 : index
      %59 = vector.load %arg7[%c0_28, %c0_29] : memref<128x128xf32, #tpu.memory_space<vmem>>, vector<128x128xf32>
      %cst_30 = arith.constant dense<0.000000e+00> : vector<24x128xf32>
      %60 = tpu.matmul %54, %59, %cst_30 {dimension_numbers = #tpu.dot_dimension_numbers<[1], [0], [0], [1], [0, 0, 1, 1], [], []>} : vector<24x128xf32>, vector<128x128xf32>, vector<24x128xf32> -> vector<24x128xf32>
      %c0_31 = arith.constant 0 : index
      %c0_32 = arith.constant 0 : index
      %61 = vector.load %arg8[%c0_31, %c0_32] : memref<1x128xf32, #tpu.memory_space<vmem>>, vector<1x128xf32>
      %62 = vector.broadcast %61 : vector<1x128xf32> to vector<24x128xf32>
      %63 = arith.addf %60, %62 : vector<24x128xf32>
      %c0_33 = arith.constant 0 : index
      %c0_34 = arith.constant 0 : index
      %64 = vector.load %arg9[%c0_33, %c0_34] : memref<24x128xf32, #tpu.memory_space<vmem>>, vector<24x128xf32>
      tpu.vector_store %arg9[%c0_33, %c0_34], %63 {strides = array<i32>} : memref<24x128xf32, #tpu.memory_space<vmem>>, vector<24x128xf32>,
    } else {
    }
    return
  }
  func.func @transform_0(%arg0: i32) -> (i32, i32) {
    %c0_i32 = arith.constant 0 : i32
    %c0_i32_0 = arith.constant 0 : i32
    %c0_i32_1 = arith.constant 0 : i32
    return %c0_i32, %c0_i32_0 : i32, i32
  }
  func.func @transform_1(%arg0: i32) -> (i32, i32) {
    %c0_i32 = arith.constant 0 : i32
    %c0_i32_0 = arith.constant 0 : i32
    %c0_i32_1 = arith.constant 0 : i32
    return %c0_i32, %c0_i32_0 : i32, i32
  }
  func.func @transform_2(%arg0: i32) -> (i32, i32) {
    %c0_i32 = arith.constant 0 : i32
    %c0_i32_0 = arith.constant 0 : i32
    %c0_i32_1 = arith.constant 0 : i32
    return %c0_i32, %c0_i32_0 : i32, i32
  }
  func.func @transform_3(%arg0: i32) -> (i32, i32) {
    %c0_i32 = arith.constant 0 : i32
    %c0_i32_0 = arith.constant 0 : i32
    %c0_i32_1 = arith.constant 0 : i32
    return %c0_i32, %c0_i32_0 : i32, i32
  }
  func.func @transform_4(%arg0: i32) -> (i32, i32, i32) {
    %c0_i32 = arith.constant 0 : i32
    %c0_i32_0 = arith.constant 0 : i32
    %c0_i32_1 = arith.constant 0 : i32
    return %arg0, %c0_i32, %c0_i32_0 : i32, i32, i32
  }
  func.func @transform_5(%arg0: i32) -> (i32, i32, i32) {
    %c0_i32 = arith.constant 0 : i32
    %c0_i32_0 = arith.constant 0 : i32
    %c0_i32_1 = arith.constant 0 : i32
    return %arg0, %c0_i32, %c0_i32_0 : i32, i32, i32
  }
  func.func @transform_6(%arg0: i32) -> (i32, i32) {
    %c0_i32 = arith.constant 0 : i32
    %c0_i32_0 = arith.constant 0 : i32
    %c0_i32_1 = arith.constant 0 : i32
    return %c0_i32, %c0_i32_0 : i32, i32
  }
  func.func @transform_7(%arg0: i32) -> (i32, i32) {
    %c0_i32 = arith.constant 0 : i32
    %c0_i32_0 = arith.constant 0 : i32
    %c0_i32_1 = arith.constant 0 : i32
    return %c0_i32, %c0_i32_0 : i32, i32
  }
  func.func @transform_8(%arg0: i32) -> (i32, i32) {
    %c0_i32 = arith.constant 0 : i32
    %c0_i32_0 = arith.constant 0 : i32
    %c0_i32_1 = arith.constant 0 : i32
    return %c0_i32, %c0_i32_0 : i32, i32
  }
}

</mosaic_0001>

<llo_original>
// kernel: forward.1
$region0: #{forward.1}
  #allocation0 [shape = 'u32[]', space=smem, size = 0x4, offset = 0x4, fixed_abs, tag = 'smem constant byte address 0x4 - core index']
  #allocation1 [shape = 'u32[72,128]{1,0:T(1,128)}', space=vmem, size = 0x9000, scoped, tag = 'internal scratch']
  #allocation2 [shape = 'f32[24,128]{1,0:T(8,128)}', space=vmem, size = 0x3000, scoped, tag = 'scratch operand']
  %s0 = inlined_call_operand.vmem [shape: f32[24,128], index: 0, kind: input, shape index: {}]
  %s1 = inlined_call_operand.vmem [shape: f32[24,128], index: 1, kind: input, shape index: {}]
  %s2 = inlined_call_operand.vmem [shape: bf16[24,24], index: 2, kind: input, shape index: {}]
  %s3 = inlined_call_operand.vmem [shape: f32[24,1], index: 3, kind: input, shape index: {}]
  %s4 = inlined_call_operand.vmem [shape: f32[3,128,128], index: 4, kind: input, shape index: {}]
  %s5 = inlined_call_operand.vmem [shape: f32[3,1,128], index: 5, kind: input, shape index: {}]
  %s6 = inlined_call_operand.vmem [shape: f32[128,128], index: 6, kind: input, shape index: {}]
  %s7 = inlined_call_operand.vmem [shape: f32[1,128], index: 7, kind: input, shape index: {}]
  %s8 = inlined_call_operand.vmem [shape: f32[24,128], index: 8, kind: output, shape index: {}]
  %s9 = sld [smem:[#allocation0]]
  $region73: #{forward.1} parent=0
    _
  %s11 = ssub.s32 1, %s9
  %s12 = scalar_select 0, %s11, %s9
  loop: start=0, step=1, limit=5
  $region2: #{forward.1} parent=0 // loop_pre_header
    _
  $region3: #{forward.1} parent=0 // loop_header
    %s14 = sphi 0, %s18
    %p15 = scmp.ge.s32.totalorder %s14, 5
    %s22 = sphi 0, %s22
    %s24 = sphi 0, %s22
    %s25 = sphi 0, %s24
    %s39 = sphi 0, %s25
    %s43 = sphi 0, %s43
    %s45 = sphi 0, %s43
    %s46 = sphi 0, %s45
    %s60 = sphi 0, %s46
    %s64 = sphi 0, %s64
    %s66 = sphi 0, %s64
    %s67 = sphi 0, %s66
    %s81 = sphi 0, %s67
    %s85 = sphi 0, %s85
    %s87 = sphi 0, %s85
    %s88 = sphi 0, %s87
    %s102 = sphi 0, %s88
    %s108 = sphi 0, %s110
    %s111 = sphi 0, %s108
    %s112 = sphi 0, %s111
    %s128 = sphi 0, %s112
    %s134 = sphi 0, %s136
    %s137 = sphi 0, %s134
    %s138 = sphi 0, %s137
    %s154 = sphi 0, %s138
    %s158 = sphi 0, %s158
    %s160 = sphi 0, %s158
    %s161 = sphi 0, %s160
    %s175 = sphi 0, %s161
    %s179 = sphi 0, %s179
    %s181 = sphi 0, %s179
    %s182 = sphi 0, %s181
    %s196 = sphi 0, %s182
    %s200 = sphi 0, %s200
    %s202 = sphi 0, %s200
    %s203 = sphi 0, %s202
    %s217 = sphi 0, %s203
  $region4: #{forward.1} parent=0 // loop_header_branch
    %17 = sbr.rel (%p15) target = $region8
  $region5: #{forward.1} parent=0 // loop_body
    %s19 = ssub.s32 %s14, 1
    %s20 = ssub.s32 %s14, 2
    %s21 = sadd.s32 %s14, 1
    %s23 = sadd.s32 %s22, 1
    %p26 = scmp.eq.s32.totalorder %s14, 2
    %p27 = scmp.ne.s32.totalorder %s22, %s24
    %p28 = scmp.eq.s32.totalorder %s14, 0
    %p29 = por %p27, %p28
    %p30 = scmp.ne.s32.totalorder %s22, %s24
    %p31 = scmp.eq.s32.totalorder %s19, 2
    %p32 = por %p30, %p31
    %p33 = scmp.ne.s32.totalorder %s24, %s25
    %p34 = scmp.eq.s32.totalorder %s19, 0
    %p35 = por %p33, %p34
    %p36 = scmp.ne.s32.totalorder %s24, %s25
    %p37 = scmp.eq.s32.totalorder %s20, 2
    %p38 = por %p36, %p37
    %p40 = scmp.ne.s32.totalorder %s25, %s39
    %p41 = scmp.eq.s32.totalorder %s20, 0
    %p42 = por %p40, %p41
    %s44 = sadd.s32 %s43, 1
    %p47 = scmp.eq.s32.totalorder %s14, 2
    %p48 = scmp.ne.s32.totalorder %s43, %s45
    %p49 = scmp.eq.s32.totalorder %s14, 0
    %p50 = por %p48, %p49
    %p51 = scmp.ne.s32.totalorder %s43, %s45
    %p52 = scmp.eq.s32.totalorder %s19, 2
    %p53 = por %p51, %p52
    %p54 = scmp.ne.s32.totalorder %s45, %s46
    %p55 = scmp.eq.s32.totalorder %s19, 0
    %p56 = por %p54, %p55
    %p57 = scmp.ne.s32.totalorder %s45, %s46
    %p58 = scmp.eq.s32.totalorder %s20, 2
    %p59 = por %p57, %p58
    %p61 = scmp.ne.s32.totalorder %s46, %s60
    %p62 = scmp.eq.s32.totalorder %s20, 0
    %p63 = por %p61, %p62
    %s65 = sadd.s32 %s64, 1
    %p68 = scmp.eq.s32.totalorder %s14, 2
    %p69 = scmp.ne.s32.totalorder %s64, %s66
    %p70 = scmp.eq.s32.totalorder %s14, 0
    %p71 = por %p69, %p70
    %p72 = scmp.ne.s32.totalorder %s64, %s66
    %p73 = scmp.eq.s32.totalorder %s19, 2
    %p74 = por %p72, %p73
    %p75 = scmp.ne.s32.totalorder %s66, %s67
    %p76 = scmp.eq.s32.totalorder %s19, 0
    %p77 = por %p75, %p76
    %p78 = scmp.ne.s32.totalorder %s66, %s67
    %p79 = scmp.eq.s32.totalorder %s20, 2
    %p80 = por %p78, %p79
    %p82 = scmp.ne.s32.totalorder %s67, %s81
    %p83 = scmp.eq.s32.totalorder %s20, 0
    %p84 = por %p82, %p83
    %s86 = sadd.s32 %s85, 1
    %p89 = scmp.eq.s32.totalorder %s14, 2
    %p90 = scmp.ne.s32.totalorder %s85, %s87
    %p91 = scmp.eq.s32.totalorder %s14, 0
    %p92 = por %p90, %p91
    %p93 = scmp.ne.s32.totalorder %s85, %s87
    %p94 = scmp.eq.s32.totalorder %s19, 2
    %p95 = por %p93, %p94
    %p96 = scmp.ne.s32.totalorder %s87, %s88
    %p97 = scmp.eq.s32.totalorder %s19, 0
    %p98 = por %p96, %p97
    %p99 = scmp.ne.s32.totalorder %s87, %s88
    %p100 = scmp.eq.s32.totalorder %s20, 2
    %p101 = por %p99, %p100
    %p103 = scmp.ne.s32.totalorder %s88, %s102
    %p104 = scmp.eq.s32.totalorder %s20, 0
    %p105 = por %p103, %p104
    %s106 = ssub.s32 %s14, %s21
    %p107 = scmp.eq.s32.totalorder %s106, 0
    %s109 = sadd.s32 %s108, 1
    %s110 = scalar_select %p107, %s108, %s109
    %p113 = pneg %p107
    %p114 = scmp.eq.s32.totalorder %s14, 2
    %p115 = por %p113, %p114
    %p116 = scmp.ne.s32.totalorder %s108, %s111
    %p117 = scmp.eq.s32.totalorder %s14, 0
    %p118 = por %p116, %p117
    %p119 = scmp.ne.s32.totalorder %s108, %s111
    %p120 = scmp.eq.s32.totalorder %s19, 2
    %p121 = por %p119, %p120
    %p122 = scmp.ne.s32.totalorder %s111, %s112
    %p123 = scmp.eq.s32.totalorder %s19, 0
    %p124 = por %p122, %p123
    %p125 = scmp.ne.s32.totalorder %s111, %s112
    %p126 = scmp.eq.s32.totalorder %s20, 2
    %p127 = por %p125, %p126
    %p129 = scmp.ne.s32.totalorder %s112, %s128
    %p130 = scmp.eq.s32.totalorder %s20, 0
    %p131 = por %p129, %p130
    %s132 = ssub.s32 %s14, %s21
    %p133 = scmp.eq.s32.totalorder %s132, 0
    %s135 = sadd.s32 %s134, 1
    %s136 = scalar_select %p133, %s134, %s135
    %p139 = pneg %p133
    %p140 = scmp.eq.s32.totalorder %s14, 2
    %p141 = por %p139, %p140
    %p142 = scmp.ne.s32.totalorder %s134, %s137
    %p143 = scmp.eq.s32.totalorder %s14, 0
    %p144 = por %p142, %p143
    %p145 = scmp.ne.s32.totalorder %s134, %s137
    %p146 = scmp.eq.s32.totalorder %s19, 2
    %p147 = por %p145, %p146
    %p148 = scmp.ne.s32.totalorder %s137, %s138
    %p149 = scmp.eq.s32.totalorder %s19, 0
    %p150 = por %p148, %p149
    %p151 = scmp.ne.s32.totalorder %s137, %s138
    %p152 = scmp.eq.s32.totalorder %s20, 2
    %p153 = por %p151, %p152
    %p155 = scmp.ne.s32.totalorder %s138, %s154
    %p156 = scmp.eq.s32.totalorder %s20, 0
    %p157 = por %p155, %p156
    %s159 = sadd.s32 %s158, 1
    %p162 = scmp.eq.s32.totalorder %s14, 2
    %p163 = scmp.ne.s32.totalorder %s158, %s160
    %p164 = scmp.eq.s32.totalorder %s14, 0
    %p165 = por %p163, %p164
    %p166 = scmp.ne.s32.totalorder %s158, %s160
    %p167 = scmp.eq.s32.totalorder %s19, 2
    %p168 = por %p166, %p167
    %p169 = scmp.ne.s32.totalorder %s160, %s161
    %p170 = scmp.eq.s32.totalorder %s19, 0
    %p171 = por %p169, %p170
    %p172 = scmp.ne.s32.totalorder %s160, %s161
    %p173 = scmp.eq.s32.totalorder %s20, 2
    %p174 = por %p172, %p173
    %p176 = scmp.ne.s32.totalorder %s161, %s175
    %p177 = scmp.eq.s32.totalorder %s20, 0
    %p178 = por %p176, %p177
    %s180 = sadd.s32 %s179, 1
    %p183 = scmp.eq.s32.totalorder %s14, 2
    %p184 = scmp.ne.s32.totalorder %s179, %s181
    %p185 = scmp.eq.s32.totalorder %s14, 0
    %p186 = por %p184, %p185
    %p187 = scmp.ne.s32.totalorder %s179, %s181
    %p188 = scmp.eq.s32.totalorder %s19, 2
    %p189 = por %p187, %p188
    %p190 = scmp.ne.s32.totalorder %s181, %s182
    %p191 = scmp.eq.s32.totalorder %s19, 0
    %p192 = por %p190, %p191
    %p193 = scmp.ne.s32.totalorder %s181, %s182
    %p194 = scmp.eq.s32.totalorder %s20, 2
    %p195 = por %p193, %p194
    %p197 = scmp.ne.s32.totalorder %s182, %s196
    %p198 = scmp.eq.s32.totalorder %s20, 0
    %p199 = por %p197, %p198
    %s201 = sadd.s32 %s200, 1
    %p204 = scmp.eq.s32.totalorder %s14, 2
    %p205 = scmp.ne.s32.totalorder %s200, %s202
    %p206 = scmp.eq.s32.totalorder %s14, 0
    %p207 = por %p205, %p206
    %p208 = scmp.ne.s32.totalorder %s200, %s202
    %p209 = scmp.eq.s32.totalorder %s19, 2
    %p210 = por %p208, %p209
    %p211 = scmp.ne.s32.totalorder %s202, %s203
    %p212 = scmp.eq.s32.totalorder %s19, 0
    %p213 = por %p211, %p212
    %p214 = scmp.ne.s32.totalorder %s202, %s203
    %p215 = scmp.eq.s32.totalorder %s20, 2
    %p216 = por %p214, %p215
    %p218 = scmp.ne.s32.totalorder %s203, %s217
    %p219 = scmp.eq.s32.totalorder %s20, 0
    %p220 = por %p218, %p219
    %p221 = scmp.le.s32.totalorder 1, %s14
    %p222 = scmp.lt.s32.totalorder %s14, 4
    %p223 = pnand %p221, %p222
    %p224 = pneg %p223
    // Predicated region
    $region9: #{forward.1} parent=5 // pred_check
      _
    $region10: #{forward.1} parent=5 // pred_check_branch
      %226 = sbr.rel (%p223) target = $region12
    $region11: #{forward.1} parent=5 // pred_region
      %s227 = ssub.s32 %s14, 1
      // Predicated region
      $region13: #{forward.1} parent=11 // pred_check
        %p228 = pneg %p35
      $region14: #{forward.1} parent=11 // pred_check_branch
        %230 = sbr.rel (%p228) target = $region16
      $region15: #{forward.1} parent=11 // pred_region
        _
      $region16: #{forward.1} parent=11 // pred_fallthru
        _
      // Predicated region
      $region17: #{forward.1} parent=11 // pred_check
        %p231 = pneg %p56
      $region18: #{forward.1} parent=11 // pred_check_branch
        %233 = sbr.rel (%p231) target = $region20
      $region19: #{forward.1} parent=11 // pred_region
        _
      $region20: #{forward.1} parent=11 // pred_fallthru
        _
      // Predicated region
      $region21: #{forward.1} parent=11 // pred_check
        %p234 = pneg %p77
      $region22: #{forward.1} parent=11 // pred_check_branch
        %236 = sbr.rel (%p234) target = $region24
      $region23: #{forward.1} parent=11 // pred_region
        _
      $region24: #{forward.1} parent=11 // pred_fallthru
        _
      // Predicated region
      $region25: #{forward.1} parent=11 // pred_check
        %p237 = pneg %p98
      $region26: #{forward.1} parent=11 // pred_check_branch
        %239 = sbr.rel (%p237) target = $region28
      $region27: #{forward.1} parent=11 // pred_region
        _
      $region28: #{forward.1} parent=11 // pred_fallthru
        _
      // Predicated region
      $region29: #{forward.1} parent=11 // pred_check
        %p240 = pneg %p171
      $region30: #{forward.1} parent=11 // pred_check_branch
        %242 = sbr.rel (%p240) target = $region32
      $region31: #{forward.1} parent=11 // pred_region
        _
      $region32: #{forward.1} parent=11 // pred_fallthru
        _
      // Predicated region
      $region33: #{forward.1} parent=11 // pred_check
        %p243 = pneg %p192
      $region34: #{forward.1} parent=11 // pred_check_branch
        %245 = sbr.rel (%p243) target = $region36
      $region35: #{forward.1} parent=11 // pred_region
        _
      $region36: #{forward.1} parent=11 // pred_fallthru
        _
    $region12: #{forward.1} parent=5 // pred_fallthru
      _
    %p246 = scmp.lt.s32.totalorder %s14, 3
    // Predicated region
    $region37: #{forward.1} parent=5 // pred_check
      %p247 = pneg %p246
    $region38: #{forward.1} parent=5 // pred_check_branch
      %249 = sbr.rel (%p247) target = $region40
    $region39: #{forward.1} parent=5 // pred_region
      // Predicated region
      $region41: #{forward.1} parent=39 // pred_check
        %p250 = pneg %p118
      $region42: #{forward.1} parent=39 // pred_check_branch
        %252 = sbr.rel (%p250) target = $region44
      $region43: #{forward.1} parent=39 // pred_region
        %p253 = scmp.lt.s32.totalorder %s14, 2
        %s254 = scalar_select %p253, %s14, 2
        %s255 = smul.addr %s254, 16
        %s256 = smul.addr %s255, 8
        %s257 = scalar_lea.vmem %s4, %s256
      $region44: #{forward.1} parent=39 // pred_fallthru
        _
      // Predicated region
      $region45: #{forward.1} parent=39 // pred_check
        %p258 = pneg %p144
      $region46: #{forward.1} parent=39 // pred_check_branch
        %260 = sbr.rel (%p258) target = $region48
      $region47: #{forward.1} parent=39 // pred_region
        %p261 = scmp.lt.s32.totalorder %s14, 2
        %s262 = scalar_select %p261, %s14, 2
        %s263 = scalar_lea.vmem %s5, %s262
      $region48: #{forward.1} parent=39 // pred_fallthru
        _
    $region40: #{forward.1} parent=5 // pred_fallthru
      _
    %p264 = scmp.le.s32.totalorder 1, %s14
    %p265 = scmp.lt.s32.totalorder %s14, 4
    %p266 = pnand %p264, %p265
    %p267 = pneg %p266
    // Predicated region
    $region49: #{forward.1} parent=5 // pred_check
      _
    $region50: #{forward.1} parent=5 // pred_check_branch
      %269 = sbr.rel (%p266) target = $region52
    $region51: #{forward.1} parent=5 // pred_region
      %s270 = ssub.s32 %s14, 1
      %p271 = pneg %p35
      %p272 = pneg %p32
      %p273 = pneg %p56
      %p274 = pneg %p53
      %p275 = pneg %p77
      %p276 = pneg %p74
      %p277 = pneg %p98
      %p278 = pneg %p95
      %p279 = scmp.lt.s32.totalorder %s19, 2
      %s280 = scalar_select %p279, %s19, 2
      %s281 = smul.addr %s280, 16
      %s282 = smul.addr %s281, 8
      %s283 = scalar_lea.vmem %s4, %s282
      %p284 = pneg %p124
      %p285 = pneg %p121
      %p286 = scmp.lt.s32.totalorder %s19, 2
      %s287 = scalar_select %p286, %s19, 2
      %s288 = scalar_lea.vmem %s5, %s287
      %p289 = pneg %p150
      %p290 = pneg %p147
      %p291 = pneg %p171
      %p292 = pneg %p168
      %p293 = pneg %p192
      %p294 = pneg %p189
      %p295 = pneg %p213
      %p296 = pneg %p210
      %p297 = scmp.lt.s32.totalorder %s19, 2
      %s298 = scalar_select %p297, %s19, 2
      %s299 = smul.addr %s298, 16
      %s300 = smul.addr %s299, 8
      %s301 = scalar_lea.vmem %s4, %s300
      %p302 = scmp.lt.s32.totalorder %s19, 2
      %s303 = scalar_select %p302, %s19, 2
      %s304 = scalar_lea.vmem %s5, %s303
      %p306 = scmp.eq.s32.totalorder %s19, 0
      // Predicated region
      $region53: #{forward.1} parent=51 // pred_check
        %p307 = pneg %p306
      $region54: #{forward.1} parent=51 // pred_check_branch
        %309 = sbr.rel (%p307) target = $region56
      $region55: #{forward.1} parent=51 // pred_region
        %v310 = vld [vmem:[%s0] sm:$0xff]
        %v311 = vld [vmem:[%s0 + $0x8] sm:$0xff]
        %v312 = vld [vmem:[%s0 + $0x10] sm:$0xff]
        %313 = vst [vmem:[#allocation2] sm:$0xff] %v310
        %314 = vst [vmem:[#allocation2 + $0x8] sm:$0xff] %v311
        %315 = vst [vmem:[#allocation2 + $0x10] sm:$0xff] %v312
      $region56: #{forward.1} parent=51 // pred_fallthru
        _
      %v316 = vld [vmem:[#allocation2] sm:$0xff]
      %v317 = vld [vmem:[#allocation2 + $0x8] sm:$0xff]
      %v318 = vld [vmem:[#allocation2 + $0x10] sm:$0xff]
      %v319 = vld [vmem:[%s2] sm:$0xf]
      %v320 = vld [vmem:[%s2 + $0x4] sm:$0xf]
      %v321 = vld [vmem:[%s2 + $0x8] sm:$0xf]
      %v322 = vld [vmem:[%s301] sm:$0xff]
      %v323 = vld [vmem:[%s301 + $0x8] sm:$0xff]
      %v324 = vld [vmem:[%s301 + $0x10] sm:$0xff]
      %v325 = vld [vmem:[%s301 + $0x18] sm:$0xff]
      %v326 = vld [vmem:[%s301 + $0x20] sm:$0xff]
      %v327 = vld [vmem:[%s301 + $0x28] sm:$0xff]
      %v328 = vld [vmem:[%s301 + $0x30] sm:$0xff]
      %v329 = vld [vmem:[%s301 + $0x38] sm:$0xff]
      %v330 = vld [vmem:[%s301 + $0x40] sm:$0xff]
      %v331 = vld [vmem:[%s301 + $0x48] sm:$0xff]
      %v332 = vld [vmem:[%s301 + $0x50] sm:$0xff]
      %v333 = vld [vmem:[%s301 + $0x58] sm:$0xff]
      %v334 = vld [vmem:[%s301 + $0x60] sm:$0xff]
      %v335 = vld [vmem:[%s301 + $0x68] sm:$0xff]
      %v336 = vld [vmem:[%s301 + $0x70] sm:$0xff]
      %v337 = vld [vmem:[%s301 + $0x78] sm:$0xff]
      %338 = vmatpush.msra.mxu0 %v337
      %339 = vmatpush.msra.mxu0 %v336
      %340 = vmatpush.msra.mxu0 %v335
      %341 = vmatpush.msra.mxu0 %v334
      %342 = vmatpush.msra.mxu0 %v333
      %343 = vmatpush.msra.mxu0 %v332
      %344 = vmatpush.msra.mxu0 %v331
      %345 = vmatpush.msra.mxu0 %v330
      %346 = vmatpush.msra.mxu0 %v329
      %347 = vmatpush.msra.mxu0 %v328
      %348 = vmatpush.msra.mxu0 %v327
      %349 = vmatpush.msra.mxu0 %v326
      %350 = vmatpush.msra.mxu0 %v325
      %351 = vmatpush.msra.mxu0 %v324
      %352 = vmatpush.msra.mxu0 %v323
      %353 = vmatpush.msra.mxu0 %v322
      %354 = vmatmul.f32.gmra.mxu0 %v316
      %v355 = vpop.f32.mrf.mxu0
      %v356 = vadd.f32 0.0, %v355
      %357 = vmatmul.f32.gmra.mxu0 %v317
      %v358 = vpop.f32.mrf.mxu0
      %v359 = vadd.f32 0.0, %v358
      %360 = vmatmul.f32.gmra.mxu0 %v318
      %v361 = vpop.f32.mrf.mxu0
      %v362 = vadd.f32 0.0, %v361
      %363 = vdwg.mxu0
      %v364 = vpack.c.bf16 %v359, %v356
      %v365 = vpack.c.bf16 %v362, %v362
      %v366 = vld [vmem:[%s304] sm:$0x1]
      %v368 = vperm.slane %v366, 0
      %v373 = vunpack.c.l.b16 %v319
      %v374 = vunpack.c.l.b16 %v320
      %v375 = vunpack.c.l.b16 %v321
      %v376 = vpack.c.b16 %v374, %v373
      %v377 = vpack.c.b16 %v375, %v375
      %380 = vxpose.xlu0.c.b16.start [1/8] %v376, 128
      %381 = vxpose.xlu0.c.b16.cont [2/8] %v377, 128
      %382 = vxpose.xlu0.c.b16.cont [3/8] 0, 128
      %383 = vxpose.xlu0.c.b16.cont [4/8] 0, 128
      %384 = vxpose.xlu0.c.b16.cont [5/8] 0, 128
      %385 = vxpose.xlu0.c.b16.cont [6/8] 0, 128
      %386 = vxpose.xlu0.c.b16.cont [7/8] 0, 128
      %387 = vxpose.xlu0.c.b16.end [8/8] 0, 128
      %v388 = vpop.trf.xlu0
      %v389 = vpop.trf.xlu0
      %v390 = vpop.trf.xlu0
      %v391 = vpop.trf.xlu0
      %v392 = vpop.trf.xlu0
      %v393 = vpop.trf.xlu0
      %v394 = vpop.trf.xlu0
      %v395 = vpop.trf.xlu0
      %vm396 = vcmask 195584
      %v398 = vsel %vm396, %v388, 0
      %v401 = vsel %vm396, %v389, 0
      %vm403 = vcmask 1043456
      %v405 = vsel %vm403, %v365, 0
      %407 = vmatpush.bf16.msra.mxu0 0
      %408 = vmatpush.bf16.msra.mxu0 0
      %409 = vmatpush.bf16.msra.mxu0 0
      %410 = vmatpush.bf16.msra.mxu0 0
      %411 = vmatpush.bf16.msra.mxu0 0
      %412 = vmatpush.bf16.msra.mxu0 0
      %413 = vmatpush.bf16.msra.mxu0 %v405
      %414 = vmatpush.bf16.msra.mxu0 %v364
      %415 = vmatmul.bf16.gmra.mxu0 %v398
      %v416 = vpop.f32.mrf.mxu0
      %v417 = vadd.f32 %v368, %v416
      %v418 = vpop.f32.mrf.mxu0
      %v419 = vadd.f32 %v368, %v418
      %420 = vmatmul.bf16.gmra.mxu0 %v401
      %v421 = vpop.f32.mrf.mxu0
      %v422 = vadd.f32 %v368, %v421
      %v423 = vpop.f32.mrf.mxu0
      %424 = vdwg.mxu0
      %v425 = vmax.f32 %v417, 0.0
      %v426 = vmax.f32 %v419, 0.0
      %v427 = vmax.f32 %v422, 0.0
      %v428 = vld [vmem:[%s3] sm:$0xff]
      %v429 = vld [vmem:[%s3 + $0x8] sm:$0xff]
      %v430 = vld [vmem:[%s3 + $0x10] sm:$0xff]
      %v431 = vmul.f32 %v425, %v425
      %v432 = vmul.f32 %v426, %v426
      %v433 = vmul.f32 %v427, %v427
      %434 = vadd.xlane.f32.xlu0 %v431
      %v435 = vpop.xlane.xlu0 %434
      %436 = vadd.xlane.f32.xlu0 %v432
      %v437 = vpop.xlane.xlu0 %436
      %438 = vadd.xlane.f32.xlu0 %v433
      %v439 = vpop.xlane.xlu0 %438
      %v440 = vpack.c.bf16 %v425, %v425
      %v441 = vpack.c.bf16 %v426, %v426
      %v442 = vpack.c.bf16 %v427, %v427
      %v443 = vpack.c.bf16 %v431, %v431
      %v444 = vpack.c.bf16 %v432, %v432
      %v445 = vpack.c.bf16 %v433, %v433
      %v449 = vunpack.c.l.b16 %v440
      %v450 = vunpack.c.l.b16 %v441
      %v451 = vunpack.c.l.b16 %v442
      %v452 = vpack.c.b16 %v450, %v449
      %v453 = vpack.c.b16 %v451, %v451
      %v458 = vunpack.c.l.b16 %v443
      %v459 = vunpack.c.l.b16 %v444
      %v460 = vunpack.c.l.b16 %v445
      %v461 = vpack.c.b16 %v459, %v458
      %v462 = vpack.c.b16 %v460, %v460
      %v465 = vsel %vm396, %v376, 0
      %v468 = vsel %vm396, %v377, 0
      %v471 = vsel %vm403, %v453, 0
      %v474 = vsel %vm403, %v462, 0
      %476 = vmatpush.bf16.msra.mxu0 0
      %477 = vmatpush.bf16.msra.mxu0 0
      %478 = vmatpush.bf16.msra.mxu0 0
      %479 = vmatpush.bf16.msra.mxu0 0
      %480 = vmatpush.bf16.msra.mxu0 0
      %481 = vmatpush.bf16.msra.mxu0 0
      %482 = vmatpush.bf16.msra.mxu0 %v471
      %483 = vmatpush.bf16.msra.mxu0 %v452
      %484 = vmatmul.bf16.gmra.mxu0 %v465
      %v485 = vpop.f32.mrf.mxu0
      %v486 = vadd.f32 0.0, %v485
      %v487 = vpop.f32.mrf.mxu0
      %v488 = vadd.f32 0.0, %v487
      %489 = vmatmul.bf16.gmra.mxu0 %v468
      %v490 = vpop.f32.mrf.mxu0
      %v491 = vadd.f32 0.0, %v490
      %v492 = vpop.f32.mrf.mxu0
      %493 = vdwg.mxu0
      %494 = vmatpush.bf16.msra.mxu0 0
      %495 = vmatpush.bf16.msra.mxu0 0
      %496 = vmatpush.bf16.msra.mxu0 0
      %497 = vmatpush.bf16.msra.mxu0 0
      %498 = vmatpush.bf16.msra.mxu0 0
      %499 = vmatpush.bf16.msra.mxu0 0
      %500 = vmatpush.bf16.msra.mxu0 %v474
      %501 = vmatpush.bf16.msra.mxu0 %v461
      %502 = vmatmul.bf16.gmra.mxu0 %v465
      %v503 = vpop.f32.mrf.mxu0
      %v504 = vadd.f32 0.0, %v503
      %v505 = vpop.f32.mrf.mxu0
      %v506 = vadd.f32 0.0, %v505
      %507 = vmatmul.bf16.gmra.mxu0 %v468
      %v508 = vpop.f32.mrf.mxu0
      %v509 = vadd.f32 0.0, %v508
      %v510 = vpop.f32.mrf.mxu0
      %511 = vdwg.mxu0
      %512 = vadd.xlane.f32.xlu0 %v504
      %v513 = vpop.xlane.xlu0 %512
      %514 = vadd.xlane.f32.xlu0 %v506
      %v515 = vpop.xlane.xlu0 %514
      %516 = vadd.xlane.f32.xlu0 %v509
      %v517 = vpop.xlane.xlu0 %516
      %v518 = vmul.f32 %v425, %v486
      %v519 = vmul.f32 %v426, %v488
      %v520 = vmul.f32 %v427, %v491
      %521 = vadd.xlane.f32.xlu0 %v518
      %v522 = vpop.xlane.xlu0 %521
      %523 = vadd.xlane.f32.xlu0 %v519
      %v524 = vpop.xlane.xlu0 %523
      %525 = vadd.xlane.f32.xlu0 %v520
      %v526 = vpop.xlane.xlu0 %525
      %v527 = vmul.f32 %v428, %v435
      %v528 = vmul.f32 %v429, %v437
      %v529 = vmul.f32 %v430, %v439
      %v530 = vadd.f32 %v527, %v513
      %v531 = vadd.f32 %v528, %v515
      %v532 = vadd.f32 %v529, %v517
      %v533 = vmul.f32 %v522, 2.0
      %v534 = vmul.f32 %v524, 2.0
      %v535 = vmul.f32 %v526, 2.0
      %v536 = vsub.f32 %v530, %v533
      %v537 = vsub.f32 %v531, %v534
      %v538 = vsub.f32 %v532, %v535
      %v539 = vmax.f32 %v536, 0.0
      %v540 = vmax.f32 %v537, 0.0
      %v541 = vmax.f32 %v538, 0.0
      %v542 = vadd.f32 %v428, 1e-10
      %v543 = vadd.f32 %v429, 1e-10
      %v544 = vadd.f32 %v430, 1e-10
      %v545 = vrcp.pop %v542
      %v546 = vmul.f32 %v542, %v545
      %v547 = vsub.f32 1.0, %v546
      %v548 = vmul.f32 %v545, %v547
      %v549 = vadd.f32 %v545, %v548
      %vm550 = vweird.f32 %v542
      %vm551 = vweird.f32 %v545
      %vm552 = vmor %vm550, %vm551
      %v553 = vsel %vm552, %v545, %v549
      %v554 = vand.u32 2147483647, %v542
      %vm555 = vcmp.eq.f32.partialorder %v554, 8.507059e+37
      %v556 = vand.u32 %v542, 2147483648
      %v557 = vor.u32 1.1754944e-38, %v556
      %v558 = vsel %vm555, %v557, %v553
      %v559 = vmul.f32 %v539, %v558
      %v560 = vrcp.pop %v543
      %v561 = vmul.f32 %v543, %v560
      %v562 = vsub.f32 1.0, %v561
      %v563 = vmul.f32 %v560, %v562
      %v564 = vadd.f32 %v560, %v563
      %vm565 = vweird.f32 %v543
      %vm566 = vweird.f32 %v560
      %vm567 = vmor %vm565, %vm566
      %v568 = vsel %vm567, %v560, %v564
      %v569 = vand.u32 2147483647, %v543
      %vm570 = vcmp.eq.f32.partialorder %v569, 8.507059e+37
      %v571 = vand.u32 %v543, 2147483648
      %v572 = vor.u32 1.1754944e-38, %v571
      %v573 = vsel %vm570, %v572, %v568
      %v574 = vmul.f32 %v540, %v573
      %v575 = vrcp.pop %v544
      %v576 = vmul.f32 %v544, %v575
      %v577 = vsub.f32 1.0, %v576
      %v578 = vmul.f32 %v575, %v577
      %v579 = vadd.f32 %v575, %v578
      %vm580 = vweird.f32 %v544
      %vm581 = vweird.f32 %v575
      %vm582 = vmor %vm580, %vm581
      %v583 = vsel %vm582, %v575, %v579
      %v584 = vand.u32 2147483647, %v544
      %vm585 = vcmp.eq.f32.partialorder %v584, 8.507059e+37
      %v586 = vand.u32 %v544, 2147483648
      %v587 = vor.u32 1.1754944e-38, %v586
      %v588 = vsel %vm585, %v587, %v583
      %v589 = vmul.f32 %v541, %v588
      %v590 = vtanh.pop %v559
      %v591 = vtanh.pop %v574
      %v592 = vtanh.pop %v589
      %v593 = vmul.f32 %v590, 2.0
      %v594 = vmul.f32 %v591, 2.0
      %v595 = vmul.f32 %v592, 2.0
      %v596 = vadd.f32 %v593, 1.0
      %v597 = vadd.f32 %v594, 1.0
      %v598 = vadd.f32 %v595, 1.0
      %v599 = vrcp.pop %v596
      %v600 = vrcp.pop %v597
      %v601 = vrcp.pop %v598
      %v602 = vmul.f32 %v590, %v599
      %v603 = vmul.f32 %v591, %v600
      %v604 = vmul.f32 %v592, %v601
      %606 = vset.pattern.permute.xlu0 0
      %607 = vperm.xlu0 %606, %v599
      %v608 = vpop.permute.xlu0 %607
      %611 = vset.pattern.permute.xlu0 0
      %612 = vperm.xlu0 %611, %v600
      %v613 = vpop.permute.xlu0 %612
      %616 = vset.pattern.permute.xlu0 0
      %617 = vperm.xlu0 %616, %v601
      %v618 = vpop.permute.xlu0 %617
      %v620 = vmul.f32 %v608, %v316
      %v621 = vmul.f32 %v613, %v317
      %v622 = vmul.f32 %v618, %v318
      %v623 = vld [vmem:[%s1] sm:$0xff]
      %v624 = vld [vmem:[%s1 + $0x8] sm:$0xff]
      %v625 = vld [vmem:[%s1 + $0x10] sm:$0xff]
      %v626 = vadd.f32 %v425, %v623
      %v627 = vadd.f32 %v426, %v624
      %v628 = vadd.f32 %v427, %v625
      %630 = vset.pattern.permute.xlu0 0
      %631 = vperm.xlu0 %630, %v602
      %v632 = vpop.permute.xlu0 %631
      %635 = vset.pattern.permute.xlu0 0
      %636 = vperm.xlu0 %635, %v603
      %v637 = vpop.permute.xlu0 %636
      %640 = vset.pattern.permute.xlu0 0
      %641 = vperm.xlu0 %640, %v604
      %v642 = vpop.permute.xlu0 %641
      %v644 = vmul.f32 %v632, %v626
      %v645 = vmul.f32 %v637, %v627
      %v646 = vmul.f32 %v642, %v628
      %v647 = vadd.f32 %v620, %v644
      %v648 = vadd.f32 %v621, %v645
      %v649 = vadd.f32 %v622, %v646
      %650 = vst [vmem:[#allocation2] sm:$0xff] %v647
      %651 = vst [vmem:[#allocation2 + $0x8] sm:$0xff] %v648
      %652 = vst [vmem:[#allocation2 + $0x10] sm:$0xff] %v649
      %p653 = scmp.eq.s32.totalorder %s19, 2
      // Predicated region
      $region57: #{forward.1} parent=51 // pred_check
        %p654 = pneg %p653
      $region58: #{forward.1} parent=51 // pred_check_branch
        %656 = sbr.rel (%p654) target = $region60
      $region59: #{forward.1} parent=51 // pred_region
        %v657 = vld [vmem:[%s6] sm:$0xff]
        %v658 = vld [vmem:[%s6 + $0x8] sm:$0xff]
        %v659 = vld [vmem:[%s6 + $0x10] sm:$0xff]
        %v660 = vld [vmem:[%s6 + $0x18] sm:$0xff]
        %v661 = vld [vmem:[%s6 + $0x20] sm:$0xff]
        %v662 = vld [vmem:[%s6 + $0x28] sm:$0xff]
        %v663 = vld [vmem:[%s6 + $0x30] sm:$0xff]
        %v664 = vld [vmem:[%s6 + $0x38] sm:$0xff]
        %v665 = vld [vmem:[%s6 + $0x40] sm:$0xff]
        %v666 = vld [vmem:[%s6 + $0x48] sm:$0xff]
        %v667 = vld [vmem:[%s6 + $0x50] sm:$0xff]
        %v668 = vld [vmem:[%s6 + $0x58] sm:$0xff]
        %v669 = vld [vmem:[%s6 + $0x60] sm:$0xff]
        %v670 = vld [vmem:[%s6 + $0x68] sm:$0xff]
        %v671 = vld [vmem:[%s6 + $0x70] sm:$0xff]
        %v672 = vld [vmem:[%s6 + $0x78] sm:$0xff]
        %v673 = vld [vmem:[%s7] sm:$0x1]
        %v675 = vperm.slane %v673, 0
        %677 = vmatpush.msra.mxu0 %v672
        %678 = vmatpush.msra.mxu0 %v671
        %679 = vmatpush.msra.mxu0 %v670
        %680 = vmatpush.msra.mxu0 %v669
        %681 = vmatpush.msra.mxu0 %v668
        %682 = vmatpush.msra.mxu0 %v667
        %683 = vmatpush.msra.mxu0 %v666
        %684 = vmatpush.msra.mxu0 %v665
        %685 = vmatpush.msra.mxu0 %v664
        %686 = vmatpush.msra.mxu0 %v663
        %687 = vmatpush.msra.mxu0 %v662
        %688 = vmatpush.msra.mxu0 %v661
        %689 = vmatpush.msra.mxu0 %v660
        %690 = vmatpush.msra.mxu0 %v659
        %691 = vmatpush.msra.mxu0 %v658
        %692 = vmatpush.msra.mxu0 %v657
        %693 = vmatmul.f32.gmra.mxu0 %v647
        %v694 = vpop.f32.mrf.mxu0
        %v695 = vadd.f32 %v675, %v694
        %696 = vmatmul.f32.gmra.mxu0 %v648
        %v697 = vpop.f32.mrf.mxu0
        %v698 = vadd.f32 %v675, %v697
        %699 = vmatmul.f32.gmra.mxu0 %v649
        %v700 = vpop.f32.mrf.mxu0
        %v701 = vadd.f32 %v675, %v700
        %702 = vdwg.mxu0
        %703 = vst [vmem:[%s8] sm:$0xff] %v695
        %704 = vst [vmem:[%s8 + $0x8] sm:$0xff] %v698
        %705 = vst [vmem:[%s8 + $0x10] sm:$0xff] %v701
      $region60: #{forward.1} parent=51 // pred_fallthru
        _
      // Predicated region
      $region61: #{forward.1} parent=51 // pred_check
        %p706 = pneg %p210
      $region62: #{forward.1} parent=51 // pred_check_branch
        %708 = sbr.rel (%p706) target = $region64
      $region63: #{forward.1} parent=51 // pred_region
        _
      $region64: #{forward.1} parent=51 // pred_fallthru
        _
      // Predicated region
      $region65: #{forward.1} parent=51 // pred_check
        %p709 = pneg %p210
      $region66: #{forward.1} parent=51 // pred_check_branch
        %711 = sbr.rel (%p709) target = $region68
      $region67: #{forward.1} parent=51 // pred_region
        _
      $region68: #{forward.1} parent=51 // pred_fallthru
        _
    $region52: #{forward.1} parent=5 // pred_fallthru
      _
    %p712 = scmp.le.s32.totalorder 2, %s14
    // Predicated region
    $region69: #{forward.1} parent=5 // pred_check
      %p713 = pneg %p712
    $region70: #{forward.1} parent=5 // pred_check_branch
      %715 = sbr.rel (%p713) target = $region72
    $region71: #{forward.1} parent=5 // pred_region
      %s716 = ssub.s32 %s14, 2
    $region72: #{forward.1} parent=5 // pred_fallthru
      _
  $region6: #{forward.1} parent=0 // loop_footer
    %s18 = sadd.s32 1, %s14
  $region7: #{forward.1} parent=0 // loop_footer_branch
    %13 = sbr.rel target = $region3
  $region8: #{forward.1} parent=0 // loop_exit
    _

// kernel: forward.1
$region0: #{forward.1}
  #allocation0 [shape = 'u32[]', space=smem, size = 0x4, offset = 0x4, fixed_abs, tag = 'smem constant byte address 0x4 - core index']
  #allocation1 [shape = 'u32[72,128]{1,0:T(1,128)}', space=vmem, size = 0x9000, scoped, tag = 'internal scratch']
  #allocation2 [shape = 'f32[24,128]{1,0:T(8,128)}', space=vmem, size = 0x3000, scoped, tag = 'scratch operand']
  %s0 = inlined_call_operand.vmem [shape: f32[24,128], index: 0, kind: input, shape index: {}]
  %s1 = inlined_call_operand.vmem [shape: f32[24,128], index: 1, kind: input, shape index: {}]
  %s2 = inlined_call_operand.vmem [shape: bf16[24,24], index: 2, kind: input, shape index: {}]
  %s3 = inlined_call_operand.vmem [shape: f32[24,1], index: 3, kind: input, shape index: {}]
  %s4 = inlined_call_operand.vmem [shape: f32[3,128,128], index: 4, kind: input, shape index: {}]
  %s5 = inlined_call_operand.vmem [shape: f32[3,1,128], index: 5, kind: input, shape index: {}]
  %s6 = inlined_call_operand.vmem [shape: f32[128,128], index: 6, kind: input, shape index: {}]
  %s7 = inlined_call_operand.vmem [shape: f32[1,128], index: 7, kind: input, shape index: {}]
  %s8 = inlined_call_operand.vmem [shape: f32[24,128], index: 8, kind: output, shape index: {}]
  %s9 = sld [smem:[#allocation0]]
  $region73: #{forward.1} parent=0
    _
  %s11 = ssub.s32 1, %s9
  %s12 = scalar_select 0, %s11, %s9
  loop: start=0, step=1, limit=5
  $region2: #{forward.1} parent=0 // loop_pre_header
    _
  $region3: #{forward.1} parent=0 // loop_header
    %s14 = sphi 0, %s18
    %p15 = scmp.ge.s32.totalorder %s14, 5
    %s22 = sphi 0, %s22
    %s24 = sphi 0, %s22
    %s25 = sphi 0, %s24
    %s39 = sphi 0, %s25
    %s43 = sphi 0, %s43
    %s45 = sphi 0, %s43
    %s46 = sphi 0, %s45
    %s60 = sphi 0, %s46
    %s64 = sphi 0, %s64
    %s66 = sphi 0, %s64
    %s67 = sphi 0, %s66
    %s81 = sphi 0, %s67
    %s85 = sphi 0, %s85
    %s87 = sphi 0, %s85
    %s88 = sphi 0, %s87
    %s102 = sphi 0, %s88
    %s108 = sphi 0, %s110
    %s111 = sphi 0, %s108
    %s112 = sphi 0, %s111
    %s128 = sphi 0, %s112
    %s134 = sphi 0, %s136
    %s137 = sphi 0, %s134
    %s138 = sphi 0, %s137
    %s154 = sphi 0, %s138
    %s158 = sphi 0, %s158
    %s160 = sphi 0, %s158
    %s161 = sphi 0, %s160
    %s175 = sphi 0, %s161
    %s179 = sphi 0, %s179
    %s181 = sphi 0, %s179
    %s182 = sphi 0, %s181
    %s196 = sphi 0, %s182
    %s200 = sphi 0, %s200
    %s202 = sphi 0, %s200
    %s203 = sphi 0, %s202
    %s217 = sphi 0, %s203
  $region4: #{forward.1} parent=0 // loop_header_branch
    %17 = sbr.rel (%p15) target = $region8
  $region5: #{forward.1} parent=0 // loop_body
    %s19 = ssub.s32 %s14, 1
    %s20 = ssub.s32 %s14, 2
    %s21 = sadd.s32 %s14, 1
    %s23 = sadd.s32 %s22, 1
    %p26 = scmp.eq.s32.totalorder %s14, 2
    %p27 = scmp.ne.s32.totalorder %s22, %s24
    %p28 = scmp.eq.s32.totalorder %s14, 0
    %p29 = por %p27, %p28
    %p30 = scmp.ne.s32.totalorder %s22, %s24
    %p31 = scmp.eq.s32.totalorder %s19, 2
    %p32 = por %p30, %p31
    %p33 = scmp.ne.s32.totalorder %s24, %s25
    %p34 = scmp.eq.s32.totalorder %s19, 0
    %p35 = por %p33, %p34
    %p36 = scmp.ne.s32.totalorder %s24, %s25
    %p37 = scmp.eq.s32.totalorder %s20, 2
    %p38 = por %p36, %p37
    %p40 = scmp.ne.s32.totalorder %s25, %s39
    %p41 = scmp.eq.s32.totalorder %s20, 0
    %p42 = por %p40, %p41
    %s44 = sadd.s32 %s43, 1
    %p47 = scmp.eq.s32.totalorder %s14, 2
    %p48 = scmp.ne.s32.totalorder %s43, %s45
    %p49 = scmp.eq.s32.totalorder %s14, 0
    %p50 = por %p48, %p49
    %p51 = scmp.ne.s32.totalorder %s43, %s45
    %p52 = scmp.eq.s32.totalorder %s19, 2
    %p53 = por %p51, %p52
    %p54 = scmp.ne.s32.totalorder %s45, %s46
    %p55 = scmp.eq.s32.totalorder %s19, 0
    %p56 = por %p54, %p55
    %p57 = scmp.ne.s32.totalorder %s45, %s46
    %p58 = scmp.eq.s32.totalorder %s20, 2
    %p59 = por %p57, %p58
    %p61 = scmp.ne.s32.totalorder %s46, %s60
    %p62 = scmp.eq.s32.totalorder %s20, 0
    %p63 = por %p61, %p62
    %s65 = sadd.s32 %s64, 1
    %p68 = scmp.eq.s32.totalorder %s14, 2
    %p69 = scmp.ne.s32.totalorder %s64, %s66
    %p70 = scmp.eq.s32.totalorder %s14, 0
    %p71 = por %p69, %p70
    %p72 = scmp.ne.s32.totalorder %s64, %s66
    %p73 = scmp.eq.s32.totalorder %s19, 2
    %p74 = por %p72, %p73
    %p75 = scmp.ne.s32.totalorder %s66, %s67
    %p76 = scmp.eq.s32.totalorder %s19, 0
    %p77 = por %p75, %p76
    %p78 = scmp.ne.s32.totalorder %s66, %s67
    %p79 = scmp.eq.s32.totalorder %s20, 2
    %p80 = por %p78, %p79
    %p82 = scmp.ne.s32.totalorder %s67, %s81
    %p83 = scmp.eq.s32.totalorder %s20, 0
    %p84 = por %p82, %p83
    %s86 = sadd.s32 %s85, 1
    %p89 = scmp.eq.s32.totalorder %s14, 2
    %p90 = scmp.ne.s32.totalorder %s85, %s87
    %p91 = scmp.eq.s32.totalorder %s14, 0
    %p92 = por %p90, %p91
    %p93 = scmp.ne.s32.totalorder %s85, %s87
    %p94 = scmp.eq.s32.totalorder %s19, 2
    %p95 = por %p93, %p94
    %p96 = scmp.ne.s32.totalorder %s87, %s88
    %p97 = scmp.eq.s32.totalorder %s19, 0
    %p98 = por %p96, %p97
    %p99 = scmp.ne.s32.totalorder %s87, %s88
    %p100 = scmp.eq.s32.totalorder %s20, 2
    %p101 = por %p99, %p100
    %p103 = scmp.ne.s32.totalorder %s88, %s102
    %p104 = scmp.eq.s32.totalorder %s20, 0
    %p105 = por %p103, %p104
    %s106 = ssub.s32 %s14, %s21
    %p107 = scmp.eq.s32.totalorder %s106, 0
    %s109 = sadd.s32 %s108, 1
    %s110 = scalar_select %p107, %s108, %s109
    %p113 = pneg %p107
    %p114 = scmp.eq.s32.totalorder %s14, 2
    %p115 = por %p113, %p114
    %p116 = scmp.ne.s32.totalorder %s108, %s111
    %p117 = scmp.eq.s32.totalorder %s14, 0
    %p118 = por %p116, %p117
    %p119 = scmp.ne.s32.totalorder %s108, %s111
    %p120 = scmp.eq.s32.totalorder %s19, 2
    %p121 = por %p119, %p120
    %p122 = scmp.ne.s32.totalorder %s111, %s112
    %p123 = scmp.eq.s32.totalorder %s19, 0
    %p124 = por %p122, %p123
    %p125 = scmp.ne.s32.totalorder %s111, %s112
    %p126 = scmp.eq.s32.totalorder %s20, 2
    %p127 = por %p125, %p126
    %p129 = scmp.ne.s32.totalorder %s112, %s128
    %p130 = scmp.eq.s32.totalorder %s20, 0
    %p131 = por %p129, %p130
    %s132 = ssub.s32 %s14, %s21
    %p133 = scmp.eq.s32.totalorder %s132, 0
    %s135 = sadd.s32 %s134, 1
    %s136 = scalar_select %p133, %s134, %s135
    %p139 = pneg %p133
    %p140 = scmp.eq.s32.totalorder %s14, 2
    %p141 = por %p139, %p140
    %p142 = scmp.ne.s32.totalorder %s134, %s137
    %p143 = scmp.eq.s32.totalorder %s14, 0
    %p144 = por %p142, %p143
    %p145 = scmp.ne.s32.totalorder %s134, %s137
    %p146 = scmp.eq.s32.totalorder %s19, 2
    %p147 = por %p145, %p146
    %p148 = scmp.ne.s32.totalorder %s137, %s138
    %p149 = scmp.eq.s32.totalorder %s19, 0
    %p150 = por %p148, %p149
    %p151 = scmp.ne.s32.totalorder %s137, %s138
    %p152 = scmp.eq.s32.totalorder %s20, 2
    %p153 = por %p151, %p152
    %p155 = scmp.ne.s32.totalorder %s138, %s154
    %p156 = scmp.eq.s32.totalorder %s20, 0
    %p157 = por %p155, %p156
    %s159 = sadd.s32 %s158, 1
    %p162 = scmp.eq.s32.totalorder %s14, 2
    %p163 = scmp.ne.s32.totalorder %s158, %s160
    %p164 = scmp.eq.s32.totalorder %s14, 0
    %p165 = por %p163, %p164
    %p166 = scmp.ne.s32.totalorder %s158, %s160
    %p167 = scmp.eq.s32.totalorder %s19, 2
    %p168 = por %p166, %p167
    %p169 = scmp.ne.s32.totalorder %s160, %s161
    %p170 = scmp.eq.s32.totalorder %s19, 0
    %p171 = por %p169, %p170
    %p172 = scmp.ne.s32.totalorder %s160, %s161
    %p173 = scmp.eq.s32.totalorder %s20, 2
    %p174 = por %p172, %p173
    %p176 = scmp.ne.s32.totalorder %s161, %s175
    %p177 = scmp.eq.s32.totalorder %s20, 0
    %p178 = por %p176, %p177
    %s180 = sadd.s32 %s179, 1
    %p183 = scmp.eq.s32.totalorder %s14, 2
    %p184 = scmp.ne.s32.totalorder %s179, %s181
    %p185 = scmp.eq.s32.totalorder %s14, 0
    %p186 = por %p184, %p185
    %p187 = scmp.ne.s32.totalorder %s179, %s181
    %p188 = scmp.eq.s32.totalorder %s19, 2
    %p189 = por %p187, %p188
    %p190 = scmp.ne.s32.totalorder %s181, %s182
    %p191 = scmp.eq.s32.totalorder %s19, 0
    %p192 = por %p190, %p191
    %p193 = scmp.ne.s32.totalorder %s181, %s182
    %p194 = scmp.eq.s32.totalorder %s20, 2
    %p195 = por %p193, %p194
    %p197 = scmp.ne.s32.totalorder %s182, %s196
    %p198 = scmp.eq.s32.totalorder %s20, 0
    %p199 = por %p197, %p198
    %s201 = sadd.s32 %s200, 1
    %p204 = scmp.eq.s32.totalorder %s14, 2
    %p205 = scmp.ne.s32.totalorder %s200, %s202
    %p206 = scmp.eq.s32.totalorder %s14, 0
    %p207 = por %p205, %p206
    %p208 = scmp.ne.s32.totalorder %s200, %s202
    %p209 = scmp.eq.s32.totalorder %s19, 2
    %p210 = por %p208, %p209
    %p211 = scmp.ne.s32.totalorder %s202, %s203
    %p212 = scmp.eq.s32.totalorder %s19, 0
    %p213 = por %p211, %p212
    %p214 = scmp.ne.s32.totalorder %s202, %s203
    %p215 = scmp.eq.s32.totalorder %s20, 2
    %p216 = por %p214, %p215
    %p218 = scmp.ne.s32.totalorder %s203, %s217
    %p219 = scmp.eq.s32.totalorder %s20, 0
    %p220 = por %p218, %p219
    %p221 = scmp.le.s32.totalorder 1, %s14
    %p222 = scmp.lt.s32.totalorder %s14, 4
    %p223 = pnand %p221, %p222
    %p224 = pneg %p223
    // Predicated region
    $region9: #{forward.1} parent=5 // pred_check
      _
    $region10: #{forward.1} parent=5 // pred_check_branch
      %226 = sbr.rel (%p223) target = $region12
    $region11: #{forward.1} parent=5 // pred_region
      %s227 = ssub.s32 %s14, 1
      // Predicated region
      $region13: #{forward.1} parent=11 // pred_check
        %p228 = pneg %p35
      $region14: #{forward.1} parent=11 // pred_check_branch
        %230 = sbr.rel (%p228) target = $region16
      $region15: #{forward.1} parent=11 // pred_region
        _
      $region16: #{forward.1} parent=11 // pred_fallthru
        _
      // Predicated region
      $region17: #{forward.1} parent=11 // pred_check
        %p231 = pneg %p56
      $region18: #{forward.1} parent=11 // pred_check_branch
        %233 = sbr.rel (%p231) target = $region20
      $region19: #{forward.1} parent=11 // pred_region
        _
      $region20: #{forward.1} parent=11 // pred_fallthru
        _
      // Predicated region
      $region21: #{forward.1} parent=11 // pred_check
        %p234 = pneg %p77
      $region22: #{forward.1} parent=11 // pred_check_branch
        %236 = sbr.rel (%p234) target = $region24
      $region23: #{forward.1} parent=11 // pred_region
        _
      $region24: #{forward.1} parent=11 // pred_fallthru
        _
      // Predicated region
      $region25: #{forward.1} parent=11 // pred_check
        %p237 = pneg %p98
      $region26: #{forward.1} parent=11 // pred_check_branch
        %239 = sbr.rel (%p237) target = $region28
      $region27: #{forward.1} parent=11 // pred_region
        _
      $region28: #{forward.1} parent=11 // pred_fallthru
        _
      // Predicated region
      $region29: #{forward.1} parent=11 // pred_check
        %p240 = pneg %p171
      $region30: #{forward.1} parent=11 // pred_check_branch
        %242 = sbr.rel (%p240) target = $region32
      $region31: #{forward.1} parent=11 // pred_region
        _
      $region32: #{forward.1} parent=11 // pred_fallthru
        _
      // Predicated region
      $region33: #{forward.1} parent=11 // pred_check
        %p243 = pneg %p192
      $region34: #{forward.1} parent=11 // pred_check_branch
        %245 = sbr.rel (%p243) target = $region36
      $region35: #{forward.1} parent=11 // pred_region
        _
      $region36: #{forward.1} parent=11 // pred_fallthru
        _
    $region12: #{forward.1} parent=5 // pred_fallthru
      _
    %p246 = scmp.lt.s32.totalorder %s14, 3
    // Predicated region
    $region37: #{forward.1} parent=5 // pred_check
      %p247 = pneg %p246
    $region38: #{forward.1} parent=5 // pred_check_branch
      %249 = sbr.rel (%p247) target = $region40
    $region39: #{forward.1} parent=5 // pred_region
      // Predicated region
      $region41: #{forward.1} parent=39 // pred_check
        %p250 = pneg %p118
      $region42: #{forward.1} parent=39 // pred_check_branch
        %252 = sbr.rel (%p250) target = $region44
      $region43: #{forward.1} parent=39 // pred_region
        %p253 = scmp.lt.s32.totalorder %s14, 2
        %s254 = scalar_select %p253, %s14, 2
        %s255 = smul.addr %s254, 16
        %s256 = smul.addr %s255, 8
        %s257 = scalar_lea.vmem %s4, %s256
      $region44: #{forward.1} parent=39 // pred_fallthru
        _
      // Predicated region
      $region45: #{forward.1} parent=39 // pred_check
        %p258 = pneg %p144
      $region46: #{forward.1} parent=39 // pred_check_branch
        %260 = sbr.rel (%p258) target = $region48
      $region47: #{forward.1} parent=39 // pred_region
        %p261 = scmp.lt.s32.totalorder %s14, 2
        %s262 = scalar_select %p261, %s14, 2
        %s263 = scalar_lea.vmem %s5, %s262
      $region48: #{forward.1} parent=39 // pred_fallthru
        _
    $region40: #{forward.1} parent=5 // pred_fallthru
      _
    %p264 = scmp.le.s32.totalorder 1, %s14
    %p265 = scmp.lt.s32.totalorder %s14, 4
    %p266 = pnand %p264, %p265
    %p267 = pneg %p266
    // Predicated region
    $region49: #{forward.1} parent=5 // pred_check
      _
    $region50: #{forward.1} parent=5 // pred_check_branch
      %269 = sbr.rel (%p266) target = $region52
    $region51: #{forward.1} parent=5 // pred_region
      %s270 = ssub.s32 %s14, 1
      %p271 = pneg %p35
      %p272 = pneg %p32
      %p273 = pneg %p56
      %p274 = pneg %p53
      %p275 = pneg %p77
      %p276 = pneg %p74
      %p277 = pneg %p98
      %p278 = pneg %p95
      %p279 = scmp.lt.s32.totalorder %s19, 2
      %s280 = scalar_select %p279, %s19, 2
      %s281 = smul.addr %s280, 16
      %s282 = smul.addr %s281, 8
      %s283 = scalar_lea.vmem %s4, %s282
      %p284 = pneg %p124
      %p285 = pneg %p121
      %p286 = scmp.lt.s32.totalorder %s19, 2
      %s287 = scalar_select %p286, %s19, 2
      %s288 = scalar_lea.vmem %s5, %s287
      %p289 = pneg %p150
      %p290 = pneg %p147
      %p291 = pneg %p171
      %p292 = pneg %p168
      %p293 = pneg %p192
      %p294 = pneg %p189
      %p295 = pneg %p213
      %p296 = pneg %p210
      %p297 = scmp.lt.s32.totalorder %s19, 2
      %s298 = scalar_select %p297, %s19, 2
      %s299 = smul.addr %s298, 16
      %s300 = smul.addr %s299, 8
      %s301 = scalar_lea.vmem %s4, %s300
      %p302 = scmp.lt.s32.totalorder %s19, 2
      %s303 = scalar_select %p302, %s19, 2
      %s304 = scalar_lea.vmem %s5, %s303
      %p306 = scmp.eq.s32.totalorder %s19, 0
      // Predicated region
      $region53: #{forward.1} parent=51 // pred_check
        %p307 = pneg %p306
      $region54: #{forward.1} parent=51 // pred_check_branch
        %309 = sbr.rel (%p307) target = $region56
      $region55: #{forward.1} parent=51 // pred_region
        %v310 = vld [vmem:[%s0] sm:$0xff]
        %v311 = vld [vmem:[%s0 + $0x8] sm:$0xff]
        %v312 = vld [vmem:[%s0 + $0x10] sm:$0xff]
        %313 = vst [vmem:[#allocation2] sm:$0xff] %v310
        %314 = vst [vmem:[#allocation2 + $0x8] sm:$0xff] %v311
        %315 = vst [vmem:[#allocation2 + $0x10] sm:$0xff] %v312
      $region56: #{forward.1} parent=51 // pred_fallthru
        _
      %v316 = vld [vmem:[#allocation2] sm:$0xff]
      %v317 = vld [vmem:[#allocation2 + $0x8] sm:$0xff]
      %v318 = vld [vmem:[#allocation2 + $0x10] sm:$0xff]
      %v319 = vld [vmem:[%s2] sm:$0xf]
      %v320 = vld [vmem:[%s2 + $0x4] sm:$0xf]
      %v321 = vld [vmem:[%s2 + $0x8] sm:$0xf]
      %v322 = vld [vmem:[%s301] sm:$0xff]
      %v323 = vld [vmem:[%s301 + $0x8] sm:$0xff]
      %v324 = vld [vmem:[%s301 + $0x10] sm:$0xff]
      %v325 = vld [vmem:[%s301 + $0x18] sm:$0xff]
      %v326 = vld [vmem:[%s301 + $0x20] sm:$0xff]
      %v327 = vld [vmem:[%s301 + $0x28] sm:$0xff]
      %v328 = vld [vmem:[%s301 + $0x30] sm:$0xff]
      %v329 = vld [vmem:[%s301 + $0x38] sm:$0xff]
      %v330 = vld [vmem:[%s301 + $0x40] sm:$0xff]
      %v331 = vld [vmem:[%s301 + $0x48] sm:$0xff]
      %v332 = vld [vmem:[%s301 + $0x50] sm:$0xff]
      %v333 = vld [vmem:[%s301 + $0x58] sm:$0xff]
      %v334 = vld [vmem:[%s301 + $0x60] sm:$0xff]
      %v335 = vld [vmem:[%s301 + $0x68] sm:$0xff]
      %v336 = vld [vmem:[%s301 + $0x70] sm:$0xff]
      %v337 = vld [vmem:[%s301 + $0x78] sm:$0xff]
      %338 = vmatpush.msra.mxu0 %v337
      %339 = vmatpush.msra.mxu0 %v336
      %340 = vmatpush.msra.mxu0 %v335
      %341 = vmatpush.msra.mxu0 %v334
      %342 = vmatpush.msra.mxu0 %v333
      %343 = vmatpush.msra.mxu0 %v332
      %344 = vmatpush.msra.mxu0 %v331
      %345 = vmatpush.msra.mxu0 %v330
      %346 = vmatpush.msra.mxu0 %v329
      %347 = vmatpush.msra.mxu0 %v328
      %348 = vmatpush.msra.mxu0 %v327
      %349 = vmatpush.msra.mxu0 %v326
      %350 = vmatpush.msra.mxu0 %v325
      %351 = vmatpush.msra.mxu0 %v324
      %352 = vmatpush.msra.mxu0 %v323
      %353 = vmatpush.msra.mxu0 %v322
      %354 = vmatmul.f32.gmra.mxu0 %v316
      %v355 = vpop.f32.mrf.mxu0
      %v356 = vadd.f32 0.0, %v355
      %357 = vmatmul.f32.gmra.mxu0 %v317
      %v358 = vpop.f32.mrf.mxu0
      %v359 = vadd.f32 0.0, %v358
      %360 = vmatmul.f32.gmra.mxu0 %v318
      %v361 = vpop.f32.mrf.mxu0
      %v362 = vadd.f32 0.0, %v361
      %363 = vdwg.mxu0
      %v364 = vpack.c.bf16 %v359, %v356
      %v365 = vpack.c.bf16 %v362, %v362
      %v366 = vld [vmem:[%s304] sm:$0x1]
      %v368 = vperm.slane %v366, 0
      %v373 = vunpack.c.l.b16 %v319
      %v374 = vunpack.c.l.b16 %v320
      %v375 = vunpack.c.l.b16 %v321
      %v376 = vpack.c.b16 %v374, %v373
      %v377 = vpack.c.b16 %v375, %v375
      %380 = vxpose.xlu0.c.b16.start [1/8] %v376, 128
      %381 = vxpose.xlu0.c.b16.cont [2/8] %v377, 128
      %382 = vxpose.xlu0.c.b16.cont [3/8] 0, 128
      %383 = vxpose.xlu0.c.b16.cont [4/8] 0, 128
      %384 = vxpose.xlu0.c.b16.cont [5/8] 0, 128
      %385 = vxpose.xlu0.c.b16.cont [6/8] 0, 128
      %386 = vxpose.xlu0.c.b16.cont [7/8] 0, 128
      %387 = vxpose.xlu0.c.b16.end [8/8] 0, 128
      %v388 = vpop.trf.xlu0
      %v389 = vpop.trf.xlu0
      %v390 = vpop.trf.xlu0
      %v391 = vpop.trf.xlu0
      %v392 = vpop.trf.xlu0
      %v393 = vpop.trf.xlu0
      %v394 = vpop.trf.xlu0
      %v395 = vpop.trf.xlu0
      %vm396 = vcmask 195584
      %v398 = vsel %vm396, %v388, 0
      %v401 = vsel %vm396, %v389, 0
      %vm403 = vcmask 1043456
      %v405 = vsel %vm403, %v365, 0
      %407 = vmatpush.bf16.msra.mxu0 0
      %408 = vmatpush.bf16.msra.mxu0 0
      %409 = vmatpush.bf16.msra.mxu0 0
      %410 = vmatpush.bf16.msra.mxu0 0
      %411 = vmatpush.bf16.msra.mxu0 0
      %412 = vmatpush.bf16.msra.mxu0 0
      %413 = vmatpush.bf16.msra.mxu0 %v405
      %414 = vmatpush.bf16.msra.mxu0 %v364
      %415 = vmatmul.bf16.gmra.mxu0 %v398
      %v416 = vpop.f32.mrf.mxu0
      %v417 = vadd.f32 %v368, %v416
      %v418 = vpop.f32.mrf.mxu0
      %v419 = vadd.f32 %v368, %v418
      %420 = vmatmul.bf16.gmra.mxu0 %v401
      %v421 = vpop.f32.mrf.mxu0
      %v422 = vadd.f32 %v368, %v421
      %v423 = vpop.f32.mrf.mxu0
      %424 = vdwg.mxu0
      %v425 = vmax.f32 %v417, 0.0
      %v426 = vmax.f32 %v419, 0.0
      %v427 = vmax.f32 %v422, 0.0
      %v428 = vld [vmem:[%s3] sm:$0xff]
      %v429 = vld [vmem:[%s3 + $0x8] sm:$0xff]
      %v430 = vld [vmem:[%s3 + $0x10] sm:$0xff]
      %v431 = vmul.f32 %v425, %v425
      %v432 = vmul.f32 %v426, %v426
      %v433 = vmul.f32 %v427, %v427
      %434 = vadd.xlane.f32.xlu0 %v431
      %v435 = vpop.xlane.xlu0 %434
      %436 = vadd.xlane.f32.xlu0 %v432
      %v437 = vpop.xlane.xlu0 %436
      %438 = vadd.xlane.f32.xlu0 %v433
      %v439 = vpop.xlane.xlu0 %438
      %v440 = vpack.c.bf16 %v425, %v425
      %v441 = vpack.c.bf16 %v426, %v426
      %v442 = vpack.c.bf16 %v427, %v427
      %v443 = vpack.c.bf16 %v431, %v431
      %v444 = vpack.c.bf16 %v432, %v432
      %v445 = vpack.c.bf16 %v433, %v433
      %v449 = vunpack.c.l.b16 %v440
      %v450 = vunpack.c.l.b16 %v441
      %v451 = vunpack.c.l.b16 %v442
      %v452 = vpack.c.b16 %v450, %v449
      %v453 = vpack.c.b16 %v451, %v451
      %v458 = vunpack.c.l.b16 %v443
      %v459 = vunpack.c.l.b16 %v444
      %v460 = vunpack.c.l.b16 %v445
      %v461 = vpack.c.b16 %v459, %v458
      %v462 = vpack.c.b16 %v460, %v460
      %v465 = vsel %vm396, %v376, 0
      %v468 = vsel %vm396, %v377, 0
      %v471 = vsel %vm403, %v453, 0
      %v474 = vsel %vm403, %v462, 0
      %476 = vmatpush.bf16.msra.mxu0 0
      %477 = vmatpush.bf16.msra.mxu0 0
      %478 = vmatpush.bf16.msra.mxu0 0
      %479 = vmatpush.bf16.msra.mxu0 0
      %480 = vmatpush.bf16.msra.mxu0 0
      %481 = vmatpush.bf16.msra.mxu0 0
      %482 = vmatpush.bf16.msra.mxu0 %v471
      %483 = vmatpush.bf16.msra.mxu0 %v452
      %484 = vmatmul.bf16.gmra.mxu0 %v465
      %v485 = vpop.f32.mrf.mxu0
      %v486 = vadd.f32 0.0, %v485
      %v487 = vpop.f32.mrf.mxu0
      %v488 = vadd.f32 0.0, %v487
      %489 = vmatmul.bf16.gmra.mxu0 %v468
      %v490 = vpop.f32.mrf.mxu0
      %v491 = vadd.f32 0.0, %v490
      %v492 = vpop.f32.mrf.mxu0
      %493 = vdwg.mxu0
      %494 = vmatpush.bf16.msra.mxu0 0
      %495 = vmatpush.bf16.msra.mxu0 0
      %496 = vmatpush.bf16.msra.mxu0 0
      %497 = vmatpush.bf16.msra.mxu0 0
      %498 = vmatpush.bf16.msra.mxu0 0
      %499 = vmatpush.bf16.msra.mxu0 0
      %500 = vmatpush.bf16.msra.mxu0 %v474
      %501 = vmatpush.bf16.msra.mxu0 %v461
      %502 = vmatmul.bf16.gmra.mxu0 %v465
      %v503 = vpop.f32.mrf.mxu0
      %v504 = vadd.f32 0.0, %v503
      %v505 = vpop.f32.mrf.mxu0
      %v506 = vadd.f32 0.0, %v505
      %507 = vmatmul.bf16.gmra.mxu0 %v468
      %v508 = vpop.f32.mrf.mxu0
      %v509 = vadd.f32 0.0, %v508
      %v510 = vpop.f32.mrf.mxu0
      %511 = vdwg.mxu0
      %512 = vadd.xlane.f32.xlu0 %v504
      %v513 = vpop.xlane.xlu0 %512
      %514 = vadd.xlane.f32.xlu0 %v506
      %v515 = vpop.xlane.xlu0 %514
      %516 = vadd.xlane.f32.xlu0 %v509
      %v517 = vpop.xlane.xlu0 %516
      %v518 = vmul.f32 %v425, %v486
      %v519 = vmul.f32 %v426, %v488
      %v520 = vmul.f32 %v427, %v491
      %521 = vadd.xlane.f32.xlu0 %v518
      %v522 = vpop.xlane.xlu0 %521
      %523 = vadd.xlane.f32.xlu0 %v519
      %v524 = vpop.xlane.xlu0 %523
      %525 = vadd.xlane.f32.xlu0 %v520
      %v526 = vpop.xlane.xlu0 %525
      %v527 = vmul.f32 %v428, %v435
      %v528 = vmul.f32 %v429, %v437
      %v529 = vmul.f32 %v430, %v439
      %v530 = vadd.f32 %v527, %v513
      %v531 = vadd.f32 %v528, %v515
      %v532 = vadd.f32 %v529, %v517
      %v533 = vmul.f32 %v522, 2.0
      %v534 = vmul.f32 %v524, 2.0
      %v535 = vmul.f32 %v526, 2.0
      %v536 = vsub.f32 %v530, %v533
      %v537 = vsub.f32 %v531, %v534
      %v538 = vsub.f32 %v532, %v535
      %v539 = vmax.f32 %v536, 0.0
      %v540 = vmax.f32 %v537, 0.0
      %v541 = vmax.f32 %v538, 0.0
      %v542 = vadd.f32 %v428, 1e-10
      %v543 = vadd.f32 %v429, 1e-10
      %v544 = vadd.f32 %v430, 1e-10
      %v545 = vrcp.pop %v542
      %v546 = vmul.f32 %v542, %v545
      %v547 = vsub.f32 1.0, %v546
      %v548 = vmul.f32 %v545, %v547
      %v549 = vadd.f32 %v545, %v548
      %vm550 = vweird.f32 %v542
      %vm551 = vweird.f32 %v545
      %vm552 = vmor %vm550, %vm551
      %v553 = vsel %vm552, %v545, %v549
      %v554 = vand.u32 2147483647, %v542
      %vm555 = vcmp.eq.f32.partialorder %v554, 8.507059e+37
      %v556 = vand.u32 %v542, 2147483648
      %v557 = vor.u32 1.1754944e-38, %v556
      %v558 = vsel %vm555, %v557, %v553
      %v559 = vmul.f32 %v539, %v558
      %v560 = vrcp.pop %v543
      %v561 = vmul.f32 %v543, %v560
      %v562 = vsub.f32 1.0, %v561
      %v563 = vmul.f32 %v560, %v562
      %v564 = vadd.f32 %v560, %v563
      %vm565 = vweird.f32 %v543
      %vm566 = vweird.f32 %v560
      %vm567 = vmor %vm565, %vm566
      %v568 = vsel %vm567, %v560, %v564
      %v569 = vand.u32 2147483647, %v543
      %vm570 = vcmp.eq.f32.partialorder %v569, 8.507059e+37
      %v571 = vand.u32 %v543, 2147483648
      %v572 = vor.u32 1.1754944e-38, %v571
      %v573 = vsel %vm570, %v572, %v568
      %v574 = vmul.f32 %v540, %v573
      %v575 = vrcp.pop %v544
      %v576 = vmul.f32 %v544, %v575
      %v577 = vsub.f32 1.0, %v576
      %v578 = vmul.f32 %v575, %v577
      %v579 = vadd.f32 %v575, %v578
      %vm580 = vweird.f32 %v544
      %vm581 = vweird.f32 %v575
      %vm582 = vmor %vm580, %vm581
      %v583 = vsel %vm582, %v575, %v579
      %v584 = vand.u32 2147483647, %v544
      %vm585 = vcmp.eq.f32.partialorder %v584, 8.507059e+37
      %v586 = vand.u32 %v544, 2147483648
      %v587 = vor.u32 1.1754944e-38, %v586
      %v588 = vsel %vm585, %v587, %v583
      %v589 = vmul.f32 %v541, %v588
      %v590 = vtanh.pop %v559
      %v591 = vtanh.pop %v574
      %v592 = vtanh.pop %v589
      %v593 = vmul.f32 %v590, 2.0
      %v594 = vmul.f32 %v591, 2.0
      %v595 = vmul.f32 %v592, 2.0
      %v596 = vadd.f32 %v593, 1.0
      %v597 = vadd.f32 %v594, 1.0
      %v598 = vadd.f32 %v595, 1.0
      %v599 = vrcp.pop %v596
      %v600 = vrcp.pop %v597
      %v601 = vrcp.pop %v598
      %v602 = vmul.f32 %v590, %v599
      %v603 = vmul.f32 %v591, %v600
      %v604 = vmul.f32 %v592, %v601
      %606 = vset.pattern.permute.xlu0 0
      %607 = vperm.xlu0 %606, %v599
      %v608 = vpop.permute.xlu0 %607
      %611 = vset.pattern.permute.xlu0 0
      %612 = vperm.xlu0 %611, %v600
      %v613 = vpop.permute.xlu0 %612
      %616 = vset.pattern.permute.xlu0 0
      %617 = vperm.xlu0 %616, %v601
      %v618 = vpop.permute.xlu0 %617
      %v620 = vmul.f32 %v608, %v316
      %v621 = vmul.f32 %v613, %v317
      %v622 = vmul.f32 %v618, %v318
      %v623 = vld [vmem:[%s1] sm:$0xff]
      %v624 = vld [vmem:[%s1 + $0x8] sm:$0xff]
      %v625 = vld [vmem:[%s1 + $0x10] sm:$0xff]
      %v626 = vadd.f32 %v425, %v623
      %v627 = vadd.f32 %v426, %v624
      %v628 = vadd.f32 %v427, %v625
      %630 = vset.pattern.permute.xlu0 0
      %631 = vperm.xlu0 %630, %v602
      %v632 = vpop.permute.xlu0 %631
      %635 = vset.pattern.permute.xlu0 0
      %636 = vperm.xlu0 %635, %v603
      %v637 = vpop.permute.xlu0 %636
      %640 = vset.pattern.permute.xlu0 0
      %641 = vperm.xlu0 %640, %v604
      %v642 = vpop.permute.xlu0 %641
      %v644 = vmul.f32 %v632, %v626
      %v645 = vmul.f32 %v637, %v627
      %v646 = vmul.f32 %v642, %v628
      %v647 = vadd.f32 %v620, %v644
      %v648 = vadd.f32 %v621, %v645
      %v649 = vadd.f32 %v622, %v646
      %650 = vst [vmem:[#allocation2] sm:$0xff] %v647
      %651 = vst [vmem:[#allocation2 + $0x8] sm:$0xff] %v648
      %652 = vst [vmem:[#allocation2 + $0x10] sm:$0xff] %v649
      %p653 = scmp.eq.s32.totalorder %s19, 2
      // Predicated region
      $region57: #{forward.1} parent=51 // pred_check
        %p654 = pneg %p653
      $region58: #{forward.1} parent=51 // pred_check_branch
        %656 = sbr.rel (%p654) target = $region60
      $region59: #{forward.1} parent=51 // pred_region
        %v657 = vld [vmem:[%s6] sm:$0xff]
        %v658 = vld [vmem:[%s6 + $0x8] sm:$0xff]
        %v659 = vld [vmem:[%s6 + $0x10] sm:$0xff]
        %v660 = vld [vmem:[%s6 + $0x18] sm:$0xff]
        %v661 = vld [vmem:[%s6 + $0x20] sm:$0xff]
        %v662 = vld [vmem:[%s6 + $0x28] sm:$0xff]
        %v663 = vld [vmem:[%s6 + $0x30] sm:$0xff]
        %v664 = vld [vmem:[%s6 + $0x38] sm:$0xff]
        %v665 = vld [vmem:[%s6 + $0x40] sm:$0xff]
        %v666 = vld [vmem:[%s6 + $0x48] sm:$0xff]
        %v667 = vld [vmem:[%s6 + $0x50] sm:$0xff]
        %v668 = vld [vmem:[%s6 + $0x58] sm:$0xff]
        %v669 = vld [vmem:[%s6 + $0x60] sm:$0xff]
        %v670 = vld [vmem:[%s6 + $0x68] sm:$0xff]
        %v671 = vld [vmem:[%s6 + $0x70] sm:$0xff]
        %v672 = vld [vmem:[%s6 + $0x78] sm:$0xff]
        %v673 = vld [vmem:[%s7] sm:$0x1]
        %v675 = vperm.slane %v673, 0
        %677 = vmatpush.msra.mxu0 %v672
        %678 = vmatpush.msra.mxu0 %v671
        %679 = vmatpush.msra.mxu0 %v670
        %680 = vmatpush.msra.mxu0 %v669
        %681 = vmatpush.msra.mxu0 %v668
        %682 = vmatpush.msra.mxu0 %v667
        %683 = vmatpush.msra.mxu0 %v666
        %684 = vmatpush.msra.mxu0 %v665
        %685 = vmatpush.msra.mxu0 %v664
        %686 = vmatpush.msra.mxu0 %v663
        %687 = vmatpush.msra.mxu0 %v662
        %688 = vmatpush.msra.mxu0 %v661
        %689 = vmatpush.msra.mxu0 %v660
        %690 = vmatpush.msra.mxu0 %v659
        %691 = vmatpush.msra.mxu0 %v658
        %692 = vmatpush.msra.mxu0 %v657
        %693 = vmatmul.f32.gmra.mxu0 %v647
        %v694 = vpop.f32.mrf.mxu0
        %v695 = vadd.f32 %v675, %v694
        %696 = vmatmul.f32.gmra.mxu0 %v648
        %v697 = vpop.f32.mrf.mxu0
        %v698 = vadd.f32 %v675, %v697
        %699 = vmatmul.f32.gmra.mxu0 %v649
        %v700 = vpop.f32.mrf.mxu0
        %v701 = vadd.f32 %v675, %v700
        %702 = vdwg.mxu0
        %703 = vst [vmem:[%s8] sm:$0xff] %v695
        %704 = vst [vmem:[%s8 + $0x8] sm:$0xff] %v698
        %705 = vst [vmem:[%s8 + $0x10] sm:$0xff] %v701
      $region60: #{forward.1} parent=51 // pred_fallthru
        _
      // Predicated region
      $region61: #{forward.1} parent=51 // pred_check
        %p706 = pneg %p210
      $region62: #{forward.1} parent=51 // pred_check_branch
        %708 = sbr.rel (%p706) target = $region64
      $region63: #{forward.1} parent=51 // pred_region
        _
      $region64: #{forward.1} parent=51 // pred_fallthru
        _
      // Predicated region
      $region65: #{forward.1} parent=51 // pred_check
        %p709 = pneg %p210
      $region66: #{forward.1} parent=51 // pred_check_branch
        %711 = sbr.rel (%p709) target = $region68
      $region67: #{forward.1} parent=51 // pred_region
        _
      $region68: #{forward.1} parent=51 // pred_fallthru
        _
    $region52: #{forward.1} parent=5 // pred_fallthru
      _
    %p712 = scmp.le.s32.totalorder 2, %s14
    // Predicated region
    $region69: #{forward.1} parent=5 // pred_check
      %p713 = pneg %p712
    $region70: #{forward.1} parent=5 // pred_check_branch
      %715 = sbr.rel (%p713) target = $region72
    $region71: #{forward.1} parent=5 // pred_region
      %s716 = ssub.s32 %s14, 2
    $region72: #{forward.1} parent=5 // pred_fallthru
      _
  $region6: #{forward.1} parent=0 // loop_footer
    %s18 = sadd.s32 1, %s14
  $region7: #{forward.1} parent=0 // loop_footer_branch
    %13 = sbr.rel target = $region3
  $region8: #{forward.1} parent=0 // loop_exit
    _

</llo_original>
